<compile_context>
chip_gen: v6e
topology: v6e:2x2x1
jax: 0.10.0
libtpu: 0.0.40
codegen_flags: <defaults>
</compile_context>

<pallas_src>
import jax
import jax.numpy as jnp
import numpy as np
from jax.experimental import pallas as pl
from jax.experimental.pallas import tpu as pltpu


def _lstm_gen_kernel(x_ref, wih_ref, whh_ref, b_ref, wout_ref, bout_ref,
                     out_ref, h_ref, c_ref, hs_ref):
    """One grid step == one chunk of T_blk LSTM time steps.

    x_ref   : (T_blk, B, L)       time-major input chunk
    wih_ref : (L, 4H)             input->gates weights (i|f|g|o)
    whh_ref : (H, 4H)             hidden->gates weights
    b_ref   : (1, 4H)             combined bias (b_ih + b_hh)
    wout_ref: (H, O)              output projection
    bout_ref: (1, O)              output bias
    out_ref : (T_blk, B, O)       output chunk
    h_ref, c_ref : (B, H)         VMEM scratch carrying LSTM state across chunks
    hs_ref  : (T_blk*B, H)        VMEM scratch for the chunk's hidden states
    """
    t = pl.program_id(0)

    @pl.when(t == 0)
    def _():
        h_ref[...] = jnp.zeros_like(h_ref)
        c_ref[...] = jnp.zeros_like(c_ref)

    T, B, L = x_ref.shape
    H = h_ref.shape[-1]

    # (1) Batched input projection for the whole chunk: one MXU matmul over
    #     T*B rows, bias folded in. (T, B, L) -> (T*B, L) is a layout-free
    #     collapse because B is a multiple of 8 (sublane tile).
    x_flat = x_ref[...].reshape(T * B, L)
    gx = jnp.dot(x_flat, wih_ref[...],
                 preferred_element_type=jnp.float32) + b_ref[...]

    # (2) Sequential recurrence over the chunk, fully unrolled (T static);
    #     only h @ W_hh + elementwise gate math is on the critical path.
    #     Per-step h is written straight into VMEM scratch at static,
    #     sublane-aligned offsets (no stack/concat at the end).
    h = h_ref[...]
    c = c_ref[...]
    w_hh = whh_ref[...]
    for i in range(T):
        gates = gx[i * B:(i + 1) * B, :] + jnp.dot(
            h, w_hh, preferred_element_type=jnp.float32)
        i_g = jax.nn.sigmoid(gates[:, 0 * H:1 * H])
        f_g = jax.nn.sigmoid(gates[:, 1 * H:2 * H])
        g_g = jnp.tanh(gates[:, 2 * H:3 * H])
        o_g = jax.nn.sigmoid(gates[:, 3 * H:4 * H])
        c = f_g * c + i_g * g_g
        h = o_g * jnp.tanh(c)
        hs_ref[pl.ds(i * B, B), :] = h
    h_ref[...] = h
    c_ref[...] = c

    # (3) Batched output projection + tanh over all T*B hidden states:
    #     one matmul + one tile store per chunk.
    out = jnp.tanh(
        jnp.dot(hs_ref[...], wout_ref[...],
                preferred_element_type=jnp.float32) + bout_ref[...])
    out_ref[...] = out.reshape(T, B, -1).astype(out_ref.dtype)


def _pick_time_block(seq_len, batch_pad, max_block=32, max_rows=4096):
    """Chunk length: cap the unroll and keep chunk row count VMEM-friendly."""
    return max(1, min(max_block, seq_len, max_rows // batch_pad))


def lstm_generator_forward(z, params, time_block=None):
    """z: (batch, seq_len, latent_dim) float32 -> (batch, seq_len, output_dim)."""
    w_ih, w_hh, b, w_out, b_out = params
    B, S, L = z.shape
    H = w_hh.shape[0]
    O = w_out.shape[1]

    # Pad batch to the f32 sublane tile (8); padded rows are independent
    # and dropped afterwards.
    B_pad = max(8, -(-B // 8) * 8)

    T_blk = int(time_block) if time_block is not None else _pick_time_block(S, B_pad)
    # Pad the time axis to a multiple of T_blk; padded steps are strictly
    # after real data (forward recurrence), so they never affect real outputs.
    S_pad = -(-S // T_blk) * T_blk

    x_tm = jnp.transpose(z, (1, 0, 2))  # (S, B, L) time-major
    if (S_pad != S) or (B_pad != B):
        x_tm = jnp.pad(x_tm, ((0, S_pad - S), (0, B_pad - B), (0, 0)))
    # TODO(synk): for very large shapes, the wrapper transpose could be folded
    # into a precomputed gates_x matmul; for this latency-bound recurrence it
    # is negligible HBM traffic.

    out_tm = pl.pallas_call(
        _lstm_gen_kernel,
        out_shape=jax.ShapeDtypeStruct((S_pad, B_pad, O), jnp.float32),
        grid_spec=pltpu.PrefetchScalarGridSpec(
            num_scalar_prefetch=0,
            grid=(S_pad // T_blk,),
            in_specs=[
                pl.BlockSpec((T_blk, B_pad, L), lambda t: (t, 0, 0)),  # x chunk
                pl.BlockSpec((L, 4 * H), lambda t: (0, 0)),            # W_ih^T
                pl.BlockSpec((H, 4 * H), lambda t: (0, 0)),            # W_hh^T
                pl.BlockSpec((1, 4 * H), lambda t: (0, 0)),            # b_ih+b_hh
                pl.BlockSpec((H, O), lambda t: (0, 0)),                # W_out^T
                pl.BlockSpec((1, O), lambda t: (0, 0)),                # b_out
            ],
            out_specs=pl.BlockSpec((T_blk, B_pad, O), lambda t: (t, 0, 0)),
            scratch_shapes=[
                pltpu.VMEM((B_pad, H), jnp.float32),           # h carry
                pltpu.VMEM((B_pad, H), jnp.float32),           # c carry
                pltpu.VMEM((T_blk * B_pad, H), jnp.float32),   # chunk hidden states
            ],
        ),
        compiler_params=pltpu.CompilerParams(
            dimension_semantics=("arbitrary",)),  # time recurrence is sequential
    )(x_tm, w_ih, w_hh, b, w_out, b_out)

    return jnp.transpose(out_tm[:S, :B, :], (1, 0, 2))  # back to (B, S, O)


def init_params(key, latent_dim, hidden_dim, output_dim):
    """Deterministic init matching PyTorch shapes (stored transposed for the kernel)."""
    k = jax.random.split(key, 6)
    s_lstm = 1.0 / np.sqrt(hidden_dim)
    s_fc = 1.0 / np.sqrt(hidden_dim)
    # PyTorch weight_ih_l0: (4H, L); we keep (L, 4H). Gate order i|f|g|o.
    w_ih = jax.random.uniform(k[0], (latent_dim, 4 * hidden_dim),
                              jnp.float32, -s_lstm, s_lstm)
    w_hh = jax.random.uniform(k[1], (hidden_dim, 4 * hidden_dim),
                              jnp.float32, -s_lstm, s_lstm)
    b_ih = jax.random.uniform(k[2], (4 * hidden_dim,), jnp.float32, -s_lstm, s_lstm)
    b_hh = jax.random.uniform(k[3], (4 * hidden_dim,), jnp.float32, -s_lstm, s_lstm)
    b = (b_ih + b_hh).reshape(1, 4 * hidden_dim)
    w_out = jax.random.uniform(k[4], (hidden_dim, output_dim),
                               jnp.float32, -s_fc, s_fc)
    b_out = jax.random.uniform(k[5], (1, output_dim), jnp.float32, -s_fc, s_fc)
    return (w_ih, w_hh, b, w_out, b_out)


def reference_forward(z, params):
    """Pure-JAX reference (mirrors torch.nn.LSTM + Linear + tanh)."""
    w_ih, w_hh, b, w_out, b_out = params
    B, S, L = z.shape
    H = w_hh.shape[0]

    def step(carry, x_t):
        h, c = carry
        gates = x_t @ w_ih + h @ w_hh + b
        i_g = jax.nn.sigmoid(gates[:, 0 * H:1 * H])
        f_g = jax.nn.sigmoid(gates[:, 1 * H:2 * H])
        g_g = jnp.tanh(gates[:, 2 * H:3 * H])
        o_g = jax.nn.sigmoid(gates[:, 3 * H:4 * H])
        c = f_g * c + i_g * g_g
        h = o_g * jnp.tanh(c)
        return (h, c), h

    h0 = jnp.zeros((B, H), jnp.float32)
    c0 = jnp.zeros((B, H), jnp.float32)
    _, hs = jax.lax.scan(step, (h0, c0), jnp.transpose(z, (1, 0, 2)))
    hs = jnp.transpose(hs, (1, 0, 2))  # (B, S, H)
    return jnp.tanh(hs @ w_out + b_out)


if __name__ == "__main__":
    latent_dim, hidden_dim, seq_len, output_dim = 16, 32, 8, 4
    batch = 2

    key = jax.random.PRNGKey(0)
    kz, kp = jax.random.split(key)
    z = jax.random.normal(kz, (batch, seq_len, latent_dim), jnp.float32)
    params = init_params(kp, latent_dim, hidden_dim, output_dim)

    out = jax.block_until_ready(lstm_generator_forward(z, params))
    ref = jax.block_until_ready(reference_forward(z, params))

    assert out.shape == (batch, seq_len, output_dim)
    np.testing.assert_allclose(np.asarray(out), np.asarray(ref),
                               rtol=1e-2, atol=1e-2)
    print("KERNEL_OK")
</pallas_src>

<mosaic_0001>
module attributes {stable_mosaic.version = 11 : i64} {
  func.func @_lstm_gen_kernel(%arg0: i32, %arg1: memref<8x8x16xf32, #tpu.memory_space<vmem>>, %arg2: memref<16x128xf32, #tpu.memory_space<vmem>>, %arg3: memref<32x128xf32, #tpu.memory_space<vmem>>, %arg4: memref<1x128xf32, #tpu.memory_space<vmem>>, %arg5: memref<32x4xf32, #tpu.memory_space<vmem>>, %arg6: memref<1x4xf32, #tpu.memory_space<vmem>>, %arg7: memref<8x8x4xf32, #tpu.memory_space<vmem>>, %arg8: memref<8x32xf32, #tpu.memory_space<vmem>>, %arg9: memref<8x32xf32, #tpu.memory_space<vmem>>, %arg10: memref<64x32xf32, #tpu.memory_space<vmem>>) attributes {dimension_semantics = [#tpu.dimension_semantics<arbitrary>], iteration_bounds = array<i64: 1>, scalar_prefetch = 0 : i64, scratch_operands = 3 : i64, tpu.core_type = #tpu.core_type<tc>, window_params = [{transform_indices = @transform_0, window_bounds = array<i64: 8, 8, 16>}, {pipeline_mode = #tpu.pipeline_mode<synchronous>, transform_indices = @transform_1, window_bounds = array<i64: 16, 128>}, {pipeline_mode = #tpu.pipeline_mode<synchronous>, transform_indices = @transform_2, window_bounds = array<i64: 32, 128>}, {pipeline_mode = #tpu.pipeline_mode<synchronous>, transform_indices = @transform_3, window_bounds = array<i64: 1, 128>}, {pipeline_mode = #tpu.pipeline_mode<synchronous>, transform_indices = @transform_4, window_bounds = array<i64: 32, 4>}, {pipeline_mode = #tpu.pipeline_mode<synchronous>, transform_indices = @transform_5, window_bounds = array<i64: 1, 4>}, {transform_indices = @transform_6, window_bounds = array<i64: 8, 8, 4>}]} {
    %c0_i32 = arith.constant 0 : i32
    %0 = arith.cmpi eq, %arg0, %c0_i32 : i32
    %1 = arith.extui %0 : i1 to i32
    %c0_i32_0 = arith.constant 0 : i32
    %2 = arith.cmpi ne, %1, %c0_i32_0 : i32
    scf.if %2 {
      %cst_68 = arith.constant 0.000000e+00 : f32
      %256 = vector.broadcast %cst_68 : f32 to vector<8x32xf32>
      %c0_69 = arith.constant 0 : index
      %c0_70 = arith.constant 0 : index
      %257 = vector.load %arg8[%c0_69, %c0_70] : memref<8x32xf32, #tpu.memory_space<vmem>>, vector<8x32xf32>
      tpu.vector_store %arg8[%c0_69, %c0_70], %256 {strides = array<i32>} : memref<8x32xf32, #tpu.memory_space<vmem>>, vector<8x32xf32>,
      %cst_71 = arith.constant 0.000000e+00 : f32
      %258 = vector.broadcast %cst_71 : f32 to vector<8x32xf32>
      %c0_72 = arith.constant 0 : index
      %c0_73 = arith.constant 0 : index
      %259 = vector.load %arg9[%c0_72, %c0_73] : memref<8x32xf32, #tpu.memory_space<vmem>>, vector<8x32xf32>
      tpu.vector_store %arg9[%c0_72, %c0_73], %258 {strides = array<i32>} : memref<8x32xf32, #tpu.memory_space<vmem>>, vector<8x32xf32>,
    } else {
    }
    %c0 = arith.constant 0 : index
    %c0_1 = arith.constant 0 : index
    %c0_2 = arith.constant 0 : index
    %3 = vector.load %arg1[%c0, %c0_1, %c0_2] : memref<8x8x16xf32, #tpu.memory_space<vmem>>, vector<8x8x16xf32>
    %4 = vector.shape_cast %3 : vector<8x8x16xf32> to vector<64x16xf32>
    %c0_3 = arith.constant 0 : index
    %c0_4 = arith.constant 0 : index
    %5 = vector.load %arg2[%c0_3, %c0_4] : memref<16x128xf32, #tpu.memory_space<vmem>>, vector<16x128xf32>
    %cst = arith.constant dense<0.000000e+00> : vector<64x128xf32>
    %6 = tpu.matmul %4, %5, %cst {dimension_numbers = #tpu.dot_dimension_numbers<[1], [0], [0], [1], [0, 0, 1, 1], [], []>} : vector<64x16xf32>, vector<16x128xf32>, vector<64x128xf32> -> vector<64x128xf32>
    %c0_5 = arith.constant 0 : index
    %c0_6 = arith.constant 0 : index
    %7 = vector.load %arg4[%c0_5, %c0_6] : memref<1x128xf32, #tpu.memory_space<vmem>>, vector<1x128xf32>
    %8 = vector.broadcast %7 : vector<1x128xf32> to vector<64x128xf32>
    %9 = arith.addf %6, %8 : vector<64x128xf32>
    %c0_7 = arith.constant 0 : index
    %c0_8 = arith.constant 0 : index
    %10 = vector.load %arg8[%c0_7, %c0_8] : memref<8x32xf32, #tpu.memory_space<vmem>>, vector<8x32xf32>
    %c0_9 = arith.constant 0 : index
    %c0_10 = arith.constant 0 : index
    %11 = vector.load %arg9[%c0_9, %c0_10] : memref<8x32xf32, #tpu.memory_space<vmem>>, vector<8x32xf32>
    %c0_11 = arith.constant 0 : index
    %c0_12 = arith.constant 0 : index
    %12 = vector.load %arg3[%c0_11, %c0_12] : memref<32x128xf32, #tpu.memory_space<vmem>>, vector<32x128xf32>
    %13 = vector.extract_strided_slice %9 {offsets = [0, 0], sizes = [8, 128], strides = [1, 1]} : vector<64x128xf32> to vector<8x128xf32>
    %cst_13 = arith.constant dense<0.000000e+00> : vector<8x128xf32>
    %14 = tpu.matmul %10, %12, %cst_13 {dimension_numbers = #tpu.dot_dimension_numbers<[1], [0], [0], [1], [0, 0, 1, 1], [], []>} : vector<8x32xf32>, vector<32x128xf32>, vector<8x128xf32> -> vector<8x128xf32>
    %15 = arith.addf %13, %14 : vector<8x128xf32>
    %16 = vector.extract_strided_slice %15 {offsets = [0, 0], sizes = [8, 32], strides = [1, 1]} : vector<8x128xf32> to vector<8x32xf32>
    %17 = arith.negf %16 : vector<8x32xf32>
    %18 = math.exp %17 : vector<8x32xf32>
    %cst_14 = arith.constant 1.000000e+00 : f32
    %19 = vector.broadcast %cst_14 : f32 to vector<8x32xf32>
    %20 = arith.addf %19, %18 : vector<8x32xf32>
    %21 = arith.divf %19, %20 : vector<8x32xf32>
    %22 = vector.extract_strided_slice %15 {offsets = [0, 32], sizes = [8, 32], strides = [1, 1]} : vector<8x128xf32> to vector<8x32xf32>
    %23 = arith.negf %22 : vector<8x32xf32>
    %24 = math.exp %23 : vector<8x32xf32>
    %cst_15 = arith.constant 1.000000e+00 : f32
    %25 = vector.broadcast %cst_15 : f32 to vector<8x32xf32>
    %26 = arith.addf %25, %24 : vector<8x32xf32>
    %27 = arith.divf %25, %26 : vector<8x32xf32>
    %28 = vector.extract_strided_slice %15 {offsets = [0, 64], sizes = [8, 32], strides = [1, 1]} : vector<8x128xf32> to vector<8x32xf32>
    %29 = math.tanh %28 : vector<8x32xf32>
    %30 = vector.extract_strided_slice %15 {offsets = [0, 96], sizes = [8, 32], strides = [1, 1]} : vector<8x128xf32> to vector<8x32xf32>
    %31 = arith.negf %30 : vector<8x32xf32>
    %32 = math.exp %31 : vector<8x32xf32>
    %cst_16 = arith.constant 1.000000e+00 : f32
    %33 = vector.broadcast %cst_16 : f32 to vector<8x32xf32>
    %34 = arith.addf %33, %32 : vector<8x32xf32>
    %35 = arith.divf %33, %34 : vector<8x32xf32>
    %36 = arith.mulf %27, %11 : vector<8x32xf32>
    %37 = arith.mulf %21, %29 : vector<8x32xf32>
    %38 = arith.addf %36, %37 : vector<8x32xf32>
    %39 = math.tanh %38 : vector<8x32xf32>
    %40 = arith.mulf %35, %39 : vector<8x32xf32>
    %c0_17 = arith.constant 0 : index
    %c0_18 = arith.constant 0 : index
    %41 = vector.load %arg10[%c0_17, %c0_18] : memref<64x32xf32, #tpu.memory_space<vmem>>, vector<8x32xf32>
    tpu.vector_store %arg10[%c0_17, %c0_18], %40 {strides = array<i32>} : memref<64x32xf32, #tpu.memory_space<vmem>>, vector<8x32xf32>,
    %42 = vector.extract_strided_slice %9 {offsets = [8, 0], sizes = [8, 128], strides = [1, 1]} : vector<64x128xf32> to vector<8x128xf32>
    %cst_19 = arith.constant dense<0.000000e+00> : vector<8x128xf32>
    %43 = tpu.matmul %40, %12, %cst_19 {dimension_numbers = #tpu.dot_dimension_numbers<[1], [0], [0], [1], [0, 0, 1, 1], [], []>} : vector<8x32xf32>, vector<32x128xf32>, vector<8x128xf32> -> vector<8x128xf32>
    %44 = arith.addf %42, %43 : vector<8x128xf32>
    %45 = vector.extract_strided_slice %44 {offsets = [0, 0], sizes = [8, 32], strides = [1, 1]} : vector<8x128xf32> to vector<8x32xf32>
    %46 = arith.negf %45 : vector<8x32xf32>
    %47 = math.exp %46 : vector<8x32xf32>
    %cst_20 = arith.constant 1.000000e+00 : f32
    %48 = vector.broadcast %cst_20 : f32 to vector<8x32xf32>
    %49 = arith.addf %48, %47 : vector<8x32xf32>
    %50 = arith.divf %48, %49 : vector<8x32xf32>
    %51 = vector.extract_strided_slice %44 {offsets = [0, 32], sizes = [8, 32], strides = [1, 1]} : vector<8x128xf32> to vector<8x32xf32>
    %52 = arith.negf %51 : vector<8x32xf32>
    %53 = math.exp %52 : vector<8x32xf32>
    %cst_21 = arith.constant 1.000000e+00 : f32
    %54 = vector.broadcast %cst_21 : f32 to vector<8x32xf32>
    %55 = arith.addf %54, %53 : vector<8x32xf32>
    %56 = arith.divf %54, %55 : vector<8x32xf32>
    %57 = vector.extract_strided_slice %44 {offsets = [0, 64], sizes = [8, 32], strides = [1, 1]} : vector<8x128xf32> to vector<8x32xf32>
    %58 = math.tanh %57 : vector<8x32xf32>
    %59 = vector.extract_strided_slice %44 {offsets = [0, 96], sizes = [8, 32], strides = [1, 1]} : vector<8x128xf32> to vector<8x32xf32>
    %60 = arith.negf %59 : vector<8x32xf32>
    %61 = math.exp %60 : vector<8x32xf32>
    %cst_22 = arith.constant 1.000000e+00 : f32
    %62 = vector.broadcast %cst_22 : f32 to vector<8x32xf32>
    %63 = arith.addf %62, %61 : vector<8x32xf32>
    %64 = arith.divf %62, %63 : vector<8x32xf32>
    %65 = arith.mulf %56, %38 : vector<8x32xf32>
    %66 = arith.mulf %50, %58 : vector<8x32xf32>
    %67 = arith.addf %65, %66 : vector<8x32xf32>
    %68 = math.tanh %67 : vector<8x32xf32>
    %69 = arith.mulf %64, %68 : vector<8x32xf32>
    %c8 = arith.constant 8 : index
    %c0_23 = arith.constant 0 : index
    %70 = vector.load %arg10[%c8, %c0_23] : memref<64x32xf32, #tpu.memory_space<vmem>>, vector<8x32xf32>
    tpu.vector_store %arg10[%c8, %c0_23], %69 {strides = array<i32>} : memref<64x32xf32, #tpu.memory_space<vmem>>, vector<8x32xf32>,
    %71 = vector.extract_strided_slice %9 {offsets = [16, 0], sizes = [8, 128], strides = [1, 1]} : vector<64x128xf32> to vector<8x128xf32>
    %cst_24 = arith.constant dense<0.000000e+00> : vector<8x128xf32>
    %72 = tpu.matmul %69, %12, %cst_24 {dimension_numbers = #tpu.dot_dimension_numbers<[1], [0], [0], [1], [0, 0, 1, 1], [], []>} : vector<8x32xf32>, vector<32x128xf32>, vector<8x128xf32> -> vector<8x128xf32>
    %73 = arith.addf %71, %72 : vector<8x128xf32>
    %74 = vector.extract_strided_slice %73 {offsets = [0, 0], sizes = [8, 32], strides = [1, 1]} : vector<8x128xf32> to vector<8x32xf32>
    %75 = arith.negf %74 : vector<8x32xf32>
    %76 = math.exp %75 : vector<8x32xf32>
    %cst_25 = arith.constant 1.000000e+00 : f32
    %77 = vector.broadcast %cst_25 : f32 to vector<8x32xf32>
    %78 = arith.addf %77, %76 : vector<8x32xf32>
    %79 = arith.divf %77, %78 : vector<8x32xf32>
    %80 = vector.extract_strided_slice %73 {offsets = [0, 32], sizes = [8, 32], strides = [1, 1]} : vector<8x128xf32> to vector<8x32xf32>
    %81 = arith.negf %80 : vector<8x32xf32>
    %82 = math.exp %81 : vector<8x32xf32>
    %cst_26 = arith.constant 1.000000e+00 : f32
    %83 = vector.broadcast %cst_26 : f32 to vector<8x32xf32>
    %84 = arith.addf %83, %82 : vector<8x32xf32>
    %85 = arith.divf %83, %84 : vector<8x32xf32>
    %86 = vector.extract_strided_slice %73 {offsets = [0, 64], sizes = [8, 32], strides = [1, 1]} : vector<8x128xf32> to vector<8x32xf32>
    %87 = math.tanh %86 : vector<8x32xf32>
    %88 = vector.extract_strided_slice %73 {offsets = [0, 96], sizes = [8, 32], strides = [1, 1]} : vector<8x128xf32> to vector<8x32xf32>
    %89 = arith.negf %88 : vector<8x32xf32>
    %90 = math.exp %89 : vector<8x32xf32>
    %cst_27 = arith.constant 1.000000e+00 : f32
    %91 = vector.broadcast %cst_27 : f32 to vector<8x32xf32>
    %92 = arith.addf %91, %90 : vector<8x32xf32>
    %93 = arith.divf %91, %92 : vector<8x32xf32>
    %94 = arith.mulf %85, %67 : vector<8x32xf32>
    %95 = arith.mulf %79, %87 : vector<8x32xf32>
    %96 = arith.addf %94, %95 : vector<8x32xf32>
    %97 = math.tanh %96 : vector<8x32xf32>
    %98 = arith.mulf %93, %97 : vector<8x32xf32>
    %c16 = arith.constant 16 : index
    %c0_28 = arith.constant 0 : index
    %99 = vector.load %arg10[%c16, %c0_28] : memref<64x32xf32, #tpu.memory_space<vmem>>, vector<8x32xf32>
    tpu.vector_store %arg10[%c16, %c0_28], %98 {strides = array<i32>} : memref<64x32xf32, #tpu.memory_space<vmem>>, vector<8x32xf32>,
    %100 = vector.extract_strided_slice %9 {offsets = [24, 0], sizes = [8, 128], strides = [1, 1]} : vector<64x128xf32> to vector<8x128xf32>
    %cst_29 = arith.constant dense<0.000000e+00> : vector<8x128xf32>
    %101 = tpu.matmul %98, %12, %cst_29 {dimension_numbers = #tpu.dot_dimension_numbers<[1], [0], [0], [1], [0, 0, 1, 1], [], []>} : vector<8x32xf32>, vector<32x128xf32>, vector<8x128xf32> -> vector<8x128xf32>
    %102 = arith.addf %100, %101 : vector<8x128xf32>
    %103 = vector.extract_strided_slice %102 {offsets = [0, 0], sizes = [8, 32], strides = [1, 1]} : vector<8x128xf32> to vector<8x32xf32>
    %104 = arith.negf %103 : vector<8x32xf32>
    %105 = math.exp %104 : vector<8x32xf32>
    %cst_30 = arith.constant 1.000000e+00 : f32
    %106 = vector.broadcast %cst_30 : f32 to vector<8x32xf32>
    %107 = arith.addf %106, %105 : vector<8x32xf32>
    %108 = arith.divf %106, %107 : vector<8x32xf32>
    %109 = vector.extract_strided_slice %102 {offsets = [0, 32], sizes = [8, 32], strides = [1, 1]} : vector<8x128xf32> to vector<8x32xf32>
    %110 = arith.negf %109 : vector<8x32xf32>
    %111 = math.exp %110 : vector<8x32xf32>
    %cst_31 = arith.constant 1.000000e+00 : f32
    %112 = vector.broadcast %cst_31 : f32 to vector<8x32xf32>
    %113 = arith.addf %112, %111 : vector<8x32xf32>
    %114 = arith.divf %112, %113 : vector<8x32xf32>
    %115 = vector.extract_strided_slice %102 {offsets = [0, 64], sizes = [8, 32], strides = [1, 1]} : vector<8x128xf32> to vector<8x32xf32>
    %116 = math.tanh %115 : vector<8x32xf32>
    %117 = vector.extract_strided_slice %102 {offsets = [0, 96], sizes = [8, 32], strides = [1, 1]} : vector<8x128xf32> to vector<8x32xf32>
    %118 = arith.negf %117 : vector<8x32xf32>
    %119 = math.exp %118 : vector<8x32xf32>
    %cst_32 = arith.constant 1.000000e+00 : f32
    %120 = vector.broadcast %cst_32 : f32 to vector<8x32xf32>
    %121 = arith.addf %120, %119 : vector<8x32xf32>
    %122 = arith.divf %120, %121 : vector<8x32xf32>
    %123 = arith.mulf %114, %96 : vector<8x32xf32>
    %124 = arith.mulf %108, %116 : vector<8x32xf32>
    %125 = arith.addf %123, %124 : vector<8x32xf32>
    %126 = math.tanh %125 : vector<8x32xf32>
    %127 = arith.mulf %122, %126 : vector<8x32xf32>
    %c24 = arith.constant 24 : index
    %c0_33 = arith.constant 0 : index
    %128 = vector.load %arg10[%c24, %c0_33] : memref<64x32xf32, #tpu.memory_space<vmem>>, vector<8x32xf32>
    tpu.vector_store %arg10[%c24, %c0_33], %127 {strides = array<i32>} : memref<64x32xf32, #tpu.memory_space<vmem>>, vector<8x32xf32>,
    %129 = vector.extract_strided_slice %9 {offsets = [32, 0], sizes = [8, 128], strides = [1, 1]} : vector<64x128xf32> to vector<8x128xf32>
    %cst_34 = arith.constant dense<0.000000e+00> : vector<8x128xf32>
    %130 = tpu.matmul %127, %12, %cst_34 {dimension_numbers = #tpu.dot_dimension_numbers<[1], [0], [0], [1], [0, 0, 1, 1], [], []>} : vector<8x32xf32>, vector<32x128xf32>, vector<8x128xf32> -> vector<8x128xf32>
    %131 = arith.addf %129, %130 : vector<8x128xf32>
    %132 = vector.extract_strided_slice %131 {offsets = [0, 0], sizes = [8, 32], strides = [1, 1]} : vector<8x128xf32> to vector<8x32xf32>
    %133 = arith.negf %132 : vector<8x32xf32>
    %134 = math.exp %133 : vector<8x32xf32>
    %cst_35 = arith.constant 1.000000e+00 : f32
    %135 = vector.broadcast %cst_35 : f32 to vector<8x32xf32>
    %136 = arith.addf %135, %134 : vector<8x32xf32>
    %137 = arith.divf %135, %136 : vector<8x32xf32>
    %138 = vector.extract_strided_slice %131 {offsets = [0, 32], sizes = [8, 32], strides = [1, 1]} : vector<8x128xf32> to vector<8x32xf32>
    %139 = arith.negf %138 : vector<8x32xf32>
    %140 = math.exp %139 : vector<8x32xf32>
    %cst_36 = arith.constant 1.000000e+00 : f32
    %141 = vector.broadcast %cst_36 : f32 to vector<8x32xf32>
    %142 = arith.addf %141, %140 : vector<8x32xf32>
    %143 = arith.divf %141, %142 : vector<8x32xf32>
    %144 = vector.extract_strided_slice %131 {offsets = [0, 64], sizes = [8, 32], strides = [1, 1]} : vector<8x128xf32> to vector<8x32xf32>
    %145 = math.tanh %144 : vector<8x32xf32>
    %146 = vector.extract_strided_slice %131 {offsets = [0, 96], sizes = [8, 32], strides = [1, 1]} : vector<8x128xf32> to vector<8x32xf32>
    %147 = arith.negf %146 : vector<8x32xf32>
    %148 = math.exp %147 : vector<8x32xf32>
    %cst_37 = arith.constant 1.000000e+00 : f32
    %149 = vector.broadcast %cst_37 : f32 to vector<8x32xf32>
    %150 = arith.addf %149, %148 : vector<8x32xf32>
    %151 = arith.divf %149, %150 : vector<8x32xf32>
    %152 = arith.mulf %143, %125 : vector<8x32xf32>
    %153 = arith.mulf %137, %145 : vector<8x32xf32>
    %154 = arith.addf %152, %153 : vector<8x32xf32>
    %155 = math.tanh %154 : vector<8x32xf32>
    %156 = arith.mulf %151, %155 : vector<8x32xf32>
    %c32 = arith.constant 32 : index
    %c0_38 = arith.constant 0 : index
    %157 = vector.load %arg10[%c32, %c0_38] : memref<64x32xf32, #tpu.memory_space<vmem>>, vector<8x32xf32>
    tpu.vector_store %arg10[%c32, %c0_38], %156 {strides = array<i32>} : memref<64x32xf32, #tpu.memory_space<vmem>>, vector<8x32xf32>,
    %158 = vector.extract_strided_slice %9 {offsets = [40, 0], sizes = [8, 128], strides = [1, 1]} : vector<64x128xf32> to vector<8x128xf32>
    %cst_39 = arith.constant dense<0.000000e+00> : vector<8x128xf32>
    %159 = tpu.matmul %156, %12, %cst_39 {dimension_numbers = #tpu.dot_dimension_numbers<[1], [0], [0], [1], [0, 0, 1, 1], [], []>} : vector<8x32xf32>, vector<32x128xf32>, vector<8x128xf32> -> vector<8x128xf32>
    %160 = arith.addf %158, %159 : vector<8x128xf32>
    %161 = vector.extract_strided_slice %160 {offsets = [0, 0], sizes = [8, 32], strides = [1, 1]} : vector<8x128xf32> to vector<8x32xf32>
    %162 = arith.negf %161 : vector<8x32xf32>
    %163 = math.exp %162 : vector<8x32xf32>
    %cst_40 = arith.constant 1.000000e+00 : f32
    %164 = vector.broadcast %cst_40 : f32 to vector<8x32xf32>
    %165 = arith.addf %164, %163 : vector<8x32xf32>
    %166 = arith.divf %164, %165 : vector<8x32xf32>
    %167 = vector.extract_strided_slice %160 {offsets = [0, 32], sizes = [8, 32], strides = [1, 1]} : vector<8x128xf32> to vector<8x32xf32>
    %168 = arith.negf %167 : vector<8x32xf32>
    %169 = math.exp %168 : vector<8x32xf32>
    %cst_41 = arith.constant 1.000000e+00 : f32
    %170 = vector.broadcast %cst_41 : f32 to vector<8x32xf32>
    %171 = arith.addf %170, %169 : vector<8x32xf32>
    %172 = arith.divf %170, %171 : vector<8x32xf32>
    %173 = vector.extract_strided_slice %160 {offsets = [0, 64], sizes = [8, 32], strides = [1, 1]} : vector<8x128xf32> to vector<8x32xf32>
    %174 = math.tanh %173 : vector<8x32xf32>
    %175 = vector.extract_strided_slice %160 {offsets = [0, 96], sizes = [8, 32], strides = [1, 1]} : vector<8x128xf32> to vector<8x32xf32>
    %176 = arith.negf %175 : vector<8x32xf32>
    %177 = math.exp %176 : vector<8x32xf32>
    %cst_42 = arith.constant 1.000000e+00 : f32
    %178 = vector.broadcast %cst_42 : f32 to vector<8x32xf32>
    %179 = arith.addf %178, %177 : vector<8x32xf32>
    %180 = arith.divf %178, %179 : vector<8x32xf32>
    %181 = arith.mulf %172, %154 : vector<8x32xf32>
    %182 = arith.mulf %166, %174 : vector<8x32xf32>
    %183 = arith.addf %181, %182 : vector<8x32xf32>
    %184 = math.tanh %183 : vector<8x32xf32>
    %185 = arith.mulf %180, %184 : vector<8x32xf32>
    %c40 = arith.constant 40 : index
    %c0_43 = arith.constant 0 : index
    %186 = vector.load %arg10[%c40, %c0_43] : memref<64x32xf32, #tpu.memory_space<vmem>>, vector<8x32xf32>
    tpu.vector_store %arg10[%c40, %c0_43], %185 {strides = array<i32>} : memref<64x32xf32, #tpu.memory_space<vmem>>, vector<8x32xf32>,
    %187 = vector.extract_strided_slice %9 {offsets = [48, 0], sizes = [8, 128], strides = [1, 1]} : vector<64x128xf32> to vector<8x128xf32>
    %cst_44 = arith.constant dense<0.000000e+00> : vector<8x128xf32>
    %188 = tpu.matmul %185, %12, %cst_44 {dimension_numbers = #tpu.dot_dimension_numbers<[1], [0], [0], [1], [0, 0, 1, 1], [], []>} : vector<8x32xf32>, vector<32x128xf32>, vector<8x128xf32> -> vector<8x128xf32>
    %189 = arith.addf %187, %188 : vector<8x128xf32>
    %190 = vector.extract_strided_slice %189 {offsets = [0, 0], sizes = [8, 32], strides = [1, 1]} : vector<8x128xf32> to vector<8x32xf32>
    %191 = arith.negf %190 : vector<8x32xf32>
    %192 = math.exp %191 : vector<8x32xf32>
    %cst_45 = arith.constant 1.000000e+00 : f32
    %193 = vector.broadcast %cst_45 : f32 to vector<8x32xf32>
    %194 = arith.addf %193, %192 : vector<8x32xf32>
    %195 = arith.divf %193, %194 : vector<8x32xf32>
    %196 = vector.extract_strided_slice %189 {offsets = [0, 32], sizes = [8, 32], strides = [1, 1]} : vector<8x128xf32> to vector<8x32xf32>
    %197 = arith.negf %196 : vector<8x32xf32>
    %198 = math.exp %197 : vector<8x32xf32>
    %cst_46 = arith.constant 1.000000e+00 : f32
    %199 = vector.broadcast %cst_46 : f32 to vector<8x32xf32>
    %200 = arith.addf %199, %198 : vector<8x32xf32>
    %201 = arith.divf %199, %200 : vector<8x32xf32>
    %202 = vector.extract_strided_slice %189 {offsets = [0, 64], sizes = [8, 32], strides = [1, 1]} : vector<8x128xf32> to vector<8x32xf32>
    %203 = math.tanh %202 : vector<8x32xf32>
    %204 = vector.extract_strided_slice %189 {offsets = [0, 96], sizes = [8, 32], strides = [1, 1]} : vector<8x128xf32> to vector<8x32xf32>
    %205 = arith.negf %204 : vector<8x32xf32>
    %206 = math.exp %205 : vector<8x32xf32>
    %cst_47 = arith.constant 1.000000e+00 : f32
    %207 = vector.broadcast %cst_47 : f32 to vector<8x32xf32>
    %208 = arith.addf %207, %206 : vector<8x32xf32>
    %209 = arith.divf %207, %208 : vector<8x32xf32>
    %210 = arith.mulf %201, %183 : vector<8x32xf32>
    %211 = arith.mulf %195, %203 : vector<8x32xf32>
    %212 = arith.addf %210, %211 : vector<8x32xf32>
    %213 = math.tanh %212 : vector<8x32xf32>
    %214 = arith.mulf %209, %213 : vector<8x32xf32>
    %c48 = arith.constant 48 : index
    %c0_48 = arith.constant 0 : index
    %215 = vector.load %arg10[%c48, %c0_48] : memref<64x32xf32, #tpu.memory_space<vmem>>, vector<8x32xf32>
    tpu.vector_store %arg10[%c48, %c0_48], %214 {strides = array<i32>} : memref<64x32xf32, #tpu.memory_space<vmem>>, vector<8x32xf32>,
    %216 = vector.extract_strided_slice %9 {offsets = [56, 0], sizes = [8, 128], strides = [1, 1]} : vector<64x128xf32> to vector<8x128xf32>
    %cst_49 = arith.constant dense<0.000000e+00> : vector<8x128xf32>
    %217 = tpu.matmul %214, %12, %cst_49 {dimension_numbers = #tpu.dot_dimension_numbers<[1], [0], [0], [1], [0, 0, 1, 1], [], []>} : vector<8x32xf32>, vector<32x128xf32>, vector<8x128xf32> -> vector<8x128xf32>
    %218 = arith.addf %216, %217 : vector<8x128xf32>
    %219 = vector.extract_strided_slice %218 {offsets = [0, 0], sizes = [8, 32], strides = [1, 1]} : vector<8x128xf32> to vector<8x32xf32>
    %220 = arith.negf %219 : vector<8x32xf32>
    %221 = math.exp %220 : vector<8x32xf32>
    %cst_50 = arith.constant 1.000000e+00 : f32
    %222 = vector.broadcast %cst_50 : f32 to vector<8x32xf32>
    %223 = arith.addf %222, %221 : vector<8x32xf32>
    %224 = arith.divf %222, %223 : vector<8x32xf32>
    %225 = vector.extract_strided_slice %218 {offsets = [0, 32], sizes = [8, 32], strides = [1, 1]} : vector<8x128xf32> to vector<8x32xf32>
    %226 = arith.negf %225 : vector<8x32xf32>
    %227 = math.exp %226 : vector<8x32xf32>
    %cst_51 = arith.constant 1.000000e+00 : f32
    %228 = vector.broadcast %cst_51 : f32 to vector<8x32xf32>
    %229 = arith.addf %228, %227 : vector<8x32xf32>
    %230 = arith.divf %228, %229 : vector<8x32xf32>
    %231 = vector.extract_strided_slice %218 {offsets = [0, 64], sizes = [8, 32], strides = [1, 1]} : vector<8x128xf32> to vector<8x32xf32>
    %232 = math.tanh %231 : vector<8x32xf32>
    %233 = vector.extract_strided_slice %218 {offsets = [0, 96], sizes = [8, 32], strides = [1, 1]} : vector<8x128xf32> to vector<8x32xf32>
    %234 = arith.negf %233 : vector<8x32xf32>
    %235 = math.exp %234 : vector<8x32xf32>
    %cst_52 = arith.constant 1.000000e+00 : f32
    %236 = vector.broadcast %cst_52 : f32 to vector<8x32xf32>
    %237 = arith.addf %236, %235 : vector<8x32xf32>
    %238 = arith.divf %236, %237 : vector<8x32xf32>
    %239 = arith.mulf %230, %212 : vector<8x32xf32>
    %240 = arith.mulf %224, %232 : vector<8x32xf32>
    %241 = arith.addf %239, %240 : vector<8x32xf32>
    %242 = math.tanh %241 : vector<8x32xf32>
    %243 = arith.mulf %238, %242 : vector<8x32xf32>
    %c56 = arith.constant 56 : index
    %c0_53 = arith.constant 0 : index
    %244 = vector.load %arg10[%c56, %c0_53] : memref<64x32xf32, #tpu.memory_space<vmem>>, vector<8x32xf32>
    tpu.vector_store %arg10[%c56, %c0_53], %243 {strides = array<i32>} : memref<64x32xf32, #tpu.memory_space<vmem>>, vector<8x32xf32>,
    %c0_54 = arith.constant 0 : index
    %c0_55 = arith.constant 0 : index
    %245 = vector.load %arg8[%c0_54, %c0_55] : memref<8x32xf32, #tpu.memory_space<vmem>>, vector<8x32xf32>
    tpu.vector_store %arg8[%c0_54, %c0_55], %243 {strides = array<i32>} : memref<8x32xf32, #tpu.memory_space<vmem>>, vector<8x32xf32>,
    %c0_56 = arith.constant 0 : index
    %c0_57 = arith.constant 0 : index
    %246 = vector.load %arg9[%c0_56, %c0_57] : memref<8x32xf32, #tpu.memory_space<vmem>>, vector<8x32xf32>
    tpu.vector_store %arg9[%c0_56, %c0_57], %241 {strides = array<i32>} : memref<8x32xf32, #tpu.memory_space<vmem>>, vector<8x32xf32>,
    %c0_58 = arith.constant 0 : index
    %c0_59 = arith.constant 0 : index
    %247 = vector.load %arg10[%c0_58, %c0_59] : memref<64x32xf32, #tpu.memory_space<vmem>>, vector<64x32xf32>
    %c0_60 = arith.constant 0 : index
    %c0_61 = arith.constant 0 : index
    %248 = vector.load %arg5[%c0_60, %c0_61] : memref<32x4xf32, #tpu.memory_space<vmem>>, vector<32x4xf32>
    %cst_62 = arith.constant dense<0.000000e+00> : vector<64x4xf32>
    %249 = tpu.matmul %247, %248, %cst_62 {dimension_numbers = #tpu.dot_dimension_numbers<[1], [0], [0], [1], [0, 0, 1, 1], [], []>} : vector<64x32xf32>, vector<32x4xf32>, vector<64x4xf32> -> vector<64x4xf32>
    %c0_63 = arith.constant 0 : index
    %c0_64 = arith.constant 0 : index
    %250 = vector.load %arg6[%c0_63, %c0_64] : memref<1x4xf32, #tpu.memory_space<vmem>>, vector<1x4xf32>
    %251 = vector.broadcast %250 : vector<1x4xf32> to vector<64x4xf32>
    %252 = arith.addf %249, %251 : vector<64x4xf32>
    %253 = math.tanh %252 : vector<64x4xf32>
    %254 = vector.shape_cast %253 : vector<64x4xf32> to vector<8x8x4xf32>
    %c0_65 = arith.constant 0 : index
    %c0_66 = arith.constant 0 : index
    %c0_67 = arith.constant 0 : index
    %255 = vector.load %arg7[%c0_65, %c0_66, %c0_67] : memref<8x8x4xf32, #tpu.memory_space<vmem>>, vector<8x8x4xf32>
    tpu.vector_store %arg7[%c0_65, %c0_66, %c0_67], %254 {strides = array<i32>} : memref<8x8x4xf32, #tpu.memory_space<vmem>>, vector<8x8x4xf32>,
    return
  }
  func.func @transform_0(%arg0: i32) -> (i32, i32, i32) {
    %c0_i32 = arith.constant 0 : i32
    %c0_i32_0 = arith.constant 0 : i32
    %c0_i32_1 = arith.constant 0 : i32
    return %arg0, %c0_i32, %c0_i32_0 : i32, i32, i32
  }
  func.func @transform_1(%arg0: i32) -> (i32, i32) {
    %c0_i32 = arith.constant 0 : i32
    %c0_i32_0 = arith.constant 0 : i32
    %c0_i32_1 = arith.constant 0 : i32
    return %c0_i32, %c0_i32_0 : i32, i32
  }
  func.func @transform_2(%arg0: i32) -> (i32, i32) {
    %c0_i32 = arith.constant 0 : i32
    %c0_i32_0 = arith.constant 0 : i32
    %c0_i32_1 = arith.constant 0 : i32
    return %c0_i32, %c0_i32_0 : i32, i32
  }
  func.func @transform_3(%arg0: i32) -> (i32, i32) {
    %c0_i32 = arith.constant 0 : i32
    %c0_i32_0 = arith.constant 0 : i32
    %c0_i32_1 = arith.constant 0 : i32
    return %c0_i32, %c0_i32_0 : i32, i32
  }
  func.func @transform_4(%arg0: i32) -> (i32, i32) {
    %c0_i32 = arith.constant 0 : i32
    %c0_i32_0 = arith.constant 0 : i32
    %c0_i32_1 = arith.constant 0 : i32
    return %c0_i32, %c0_i32_0 : i32, i32
  }
  func.func @transform_5(%arg0: i32) -> (i32, i32) {
    %c0_i32 = arith.constant 0 : i32
    %c0_i32_0 = arith.constant 0 : i32
    %c0_i32_1 = arith.constant 0 : i32
    return %c0_i32, %c0_i32_0 : i32, i32
  }
  func.func @transform_6(%arg0: i32) -> (i32, i32, i32) {
    %c0_i32 = arith.constant 0 : i32
    %c0_i32_0 = arith.constant 0 : i32
    %c0_i32_1 = arith.constant 0 : i32
    return %arg0, %c0_i32, %c0_i32_0 : i32, i32, i32
  }
}

</mosaic_0001>

<llo_original>
// kernel: tpu_custom_call.1
$region0: #{tpu_custom_call.1}
  #allocation0 [shape = 'u32[]', space=smem, size = 0x4, offset = 0x4, fixed_abs, tag = 'smem constant byte address 0x4 - core index']
  #allocation1 [shape = 'u32[144,128]{1,0:T(1,128)}', space=vmem, size = 0x12000, scoped, tag = 'internal scratch']
  #allocation2 [shape = 'f32[8,32]{1,0:T(8,128)}', space=vmem, size = 0x1000, scoped, tag = 'scratch operand']
  #allocation3 [shape = 'f32[8,32]{1,0:T(8,128)}', space=vmem, size = 0x1000, scoped, tag = 'scratch operand']
  #allocation4 [shape = 'f32[64,32]{1,0:T(8,128)}', space=vmem, size = 0x8000, scoped, tag = 'scratch operand']
  %s0 = inlined_call_operand.hbm [shape: f32[8,8,16], index: 0, kind: input, shape index: {}]
  %s1 = inlined_call_operand.hbm [shape: f32[16,128], index: 1, kind: input, shape index: {}]
  %s2 = inlined_call_operand.vmem [shape: f32[32,128], index: 2, kind: input, shape index: {}]
  %s3 = inlined_call_operand.vmem [shape: f32[1,128], index: 3, kind: input, shape index: {}]
  %s4 = inlined_call_operand.vmem [shape: f32[32,4], index: 4, kind: input, shape index: {}]
  %s5 = inlined_call_operand.vmem [shape: f32[1,4], index: 5, kind: input, shape index: {}]
  %s6 = inlined_call_operand.vmem [shape: f32[8,8,4], index: 6, kind: output, shape index: {}]
  %s7 = sld [smem:[#allocation0]]
  $region46: #{tpu_custom_call.1} parent=0
    _
  %s9 = ssub.s32 1, %s7
  %s10 = scalar_select 0, %s9, %s7
  $region1: #{tpu_custom_call.1} parent=0
    #allocation5 [shape = 'u8[32768]{0}', space=vmem, size = 0x8000, scoped, tag = 'input window, operand 0, single buffered']
    #allocation6 [shape = 's32[1]{0}', space=sflag, size = 0x4, scoped, tag = 'scoped memory for tpu_custom_call.1']
    #allocation7 [shape = 'u8[8192]{0}', space=vmem, size = 0x2000, scoped, tag = 'input window, operand 1, single buffered']
    #allocation8 [shape = 's32[1]{0}', space=sflag, size = 0x4, scoped, tag = 'scoped memory for tpu_custom_call.1']
    %11 = vsyncpa [#allocation6], 0
    %12 = vsyncpa [#allocation8], 0
    // Predicated region
    $region2: #{tpu_custom_call.1} parent=1 // pred_check
      _
    $region3: #{tpu_custom_call.1} parent=1 // pred_check_branch
      %14 = sbr.rel (0) target = $region5
    $region4: #{tpu_custom_call.1} parent=1 // pred_region
      %s16 = ssub.s32 1024, 1024
      %17 = vsyncadd [#allocation6], %s16
      %s18 = sshll.u32 [#allocation5], 4
      %s19 = int_to_ptr.vmem [resolvable:$true] %s18
      %24 = dma.hbm_to_vmem [thread:$0]  %s0, 1024, %s19, [#allocation6], 128, 128, 8
    $region5: #{tpu_custom_call.1} parent=1 // pred_fallthru
      _
    // Predicated region
    $region6: #{tpu_custom_call.1} parent=1 // pred_check
      _
    $region7: #{tpu_custom_call.1} parent=1 // pred_check_branch
      %26 = sbr.rel (0) target = $region9
    $region8: #{tpu_custom_call.1} parent=1 // pred_region
      %s28 = ssub.s32 256, 256
      %29 = vsyncadd [#allocation8], %s28
      %s30 = sshll.u32 [#allocation7], 4
      %s31 = int_to_ptr.vmem [resolvable:$true] %s30
      %36 = dma.hbm_to_vmem [thread:$0]  %s1, 256, %s31, [#allocation8], 128, 128, 8
    $region9: #{tpu_custom_call.1} parent=1 // pred_fallthru
      _
    // Predicated region
    $region10: #{tpu_custom_call.1} parent=1 // pred_check
      _
    $region11: #{tpu_custom_call.1} parent=1 // pred_check_branch
      %38 = sbr.rel (0) target = $region13
    $region12: #{tpu_custom_call.1} parent=1 // pred_region
      _
    $region13: #{tpu_custom_call.1} parent=1 // pred_fallthru
      _
    // Predicated region
    $region14: #{tpu_custom_call.1} parent=1 // pred_check
      _
    $region15: #{tpu_custom_call.1} parent=1 // pred_check_branch
      %40 = sbr.rel (0) target = $region17
    $region16: #{tpu_custom_call.1} parent=1 // pred_region
      _
    $region17: #{tpu_custom_call.1} parent=1 // pred_fallthru
      _
    // Predicated region
    $region18: #{tpu_custom_call.1} parent=1 // pred_check
      _
    $region19: #{tpu_custom_call.1} parent=1 // pred_check_branch
      %42 = sbr.rel (0) target = $region21
    $region20: #{tpu_custom_call.1} parent=1 // pred_region
      _
    $region21: #{tpu_custom_call.1} parent=1 // pred_fallthru
      _
    // Predicated region
    $region22: #{tpu_custom_call.1} parent=1 // pred_check
      _
    $region23: #{tpu_custom_call.1} parent=1 // pred_check_branch
      %44 = sbr.rel (0) target = $region25
    $region24: #{tpu_custom_call.1} parent=1 // pred_region
      _
    $region25: #{tpu_custom_call.1} parent=1 // pred_fallthru
      _
    // Predicated region
    $region26: #{tpu_custom_call.1} parent=1 // pred_check
      _
    $region27: #{tpu_custom_call.1} parent=1 // pred_check_branch
      %46 = sbr.rel (0) target = $region29
    $region28: #{tpu_custom_call.1} parent=1 // pred_region
      %47 = dma.done [#allocation6], 1024
    $region29: #{tpu_custom_call.1} parent=1 // pred_fallthru
      _
    // Predicated region
    $region30: #{tpu_custom_call.1} parent=1 // pred_check
      _
    $region31: #{tpu_custom_call.1} parent=1 // pred_check_branch
      %49 = sbr.rel (0) target = $region33
    $region32: #{tpu_custom_call.1} parent=1 // pred_region
      %50 = dma.done [#allocation8], 256
    $region33: #{tpu_custom_call.1} parent=1 // pred_fallthru
      _
    %p51 = scmp.eq.s32.totalorder 0, 0
    // Predicated region
    $region34: #{tpu_custom_call.1} parent=1 // pred_check
      %p52 = pneg %p51
    $region35: #{tpu_custom_call.1} parent=1 // pred_check_branch
      %54 = sbr.rel (%p52) target = $region37
    $region36: #{tpu_custom_call.1} parent=1 // pred_region
      %vm55 = vcmask 261120
      %56 = vst.msk [vmem:[#allocation2] sm:$0xff] %vm55, 0.0
      %57 = vst.msk [vmem:[#allocation3] sm:$0xff] %vm55, 0.0
    $region37: #{tpu_custom_call.1} parent=1 // pred_fallthru
      _
    %v58 = vld [vmem:[#allocation5] sm:$0xff]
    %v59 = vld [vmem:[#allocation5 + $0x8] sm:$0xff]
    %v60 = vld [vmem:[#allocation5 + $0x10] sm:$0xff]
    %v61 = vld [vmem:[#allocation5 + $0x18] sm:$0xff]
    %v62 = vld [vmem:[#allocation5 + $0x20] sm:$0xff]
    %v63 = vld [vmem:[#allocation5 + $0x28] sm:$0xff]
    %v64 = vld [vmem:[#allocation5 + $0x30] sm:$0xff]
    %v65 = vld [vmem:[#allocation5 + $0x38] sm:$0xff]
    %v66 = vld [vmem:[#allocation7] sm:$0xff]
    %v67 = vld [vmem:[#allocation7 + $0x8] sm:$0xff]
    %v68 = vld [vmem:[%s3] sm:$0x1]
    %v70 = vlaneseq
    %v71 = vshrl.u32 %v70, 7
    %v72 = vsub.s32 0, %v71
    %v73 = vrot.slane %v68, %v72
    %vm75 = vcmask 130048
    %v77 = vsel %vm75, %v58, 0
    %v80 = vsel %vm75, %v59, 0
    %v83 = vsel %vm75, %v60, 0
    %v86 = vsel %vm75, %v61, 0
    %v89 = vsel %vm75, %v62, 0
    %v92 = vsel %vm75, %v63, 0
    %v95 = vsel %vm75, %v64, 0
    %v98 = vsel %vm75, %v65, 0
    %100 = vmatprep.subr.mxu0 0.0
    %101 = vmatpush1.msra.mxu0 0.0
    %102 = vmatprep.subr.mxu0 0.0
    %103 = vmatpush1.msra.mxu0 0.0
    %104 = vmatprep.subr.mxu0 0.0
    %105 = vmatpush1.msra.mxu0 0.0
    %106 = vmatprep.subr.mxu0 0.0
    %107 = vmatpush1.msra.mxu0 0.0
    %108 = vmatprep.subr.mxu0 0.0
    %109 = vmatpush1.msra.mxu0 0.0
    %110 = vmatprep.subr.mxu0 0.0
    %111 = vmatpush1.msra.mxu0 0.0
    %112 = vmatprep.subr.mxu0 0.0
    %113 = vmatpush1.msra.mxu0 0.0
    %114 = vmatprep.subr.mxu0 0.0
    %115 = vmatpush1.msra.mxu0 0.0
    %116 = vmatprep.subr.mxu0 0.0
    %117 = vmatpush1.msra.mxu0 0.0
    %118 = vmatprep.subr.mxu0 0.0
    %119 = vmatpush1.msra.mxu0 0.0
    %120 = vmatprep.subr.mxu0 0.0
    %121 = vmatpush1.msra.mxu0 0.0
    %122 = vmatprep.subr.mxu0 0.0
    %123 = vmatpush1.msra.mxu0 0.0
    %124 = vmatprep.subr.mxu0 0.0
    %125 = vmatpush1.msra.mxu0 0.0
    %126 = vmatprep.subr.mxu0 0.0
    %127 = vmatpush1.msra.mxu0 0.0
    %128 = vmatprep.subr.mxu0 0.0
    %129 = vmatpush1.msra.mxu0 %v67
    %130 = vmatprep.subr.mxu0 0.0
    %131 = vmatpush1.msra.mxu0 %v66
    %132 = vmatprep.subr.mxu0 0.0
    %133 = vmatpush2.msra.mxu0 0.0
    %134 = vmatprep.subr.mxu0 0.0
    %135 = vmatpush2.msra.mxu0 0.0
    %136 = vmatprep.subr.mxu0 0.0
    %137 = vmatpush2.msra.mxu0 0.0
    %138 = vmatprep.subr.mxu0 0.0
    %139 = vmatpush2.msra.mxu0 0.0
    %140 = vmatprep.subr.mxu0 0.0
    %141 = vmatpush2.msra.mxu0 0.0
    %142 = vmatprep.subr.mxu0 0.0
    %143 = vmatpush2.msra.mxu0 0.0
    %144 = vmatprep.subr.mxu0 0.0
    %145 = vmatpush2.msra.mxu0 0.0
    %146 = vmatprep.subr.mxu0 0.0
    %147 = vmatpush2.msra.mxu0 0.0
    %148 = vmatprep.subr.mxu0 0.0
    %149 = vmatpush2.msra.mxu0 0.0
    %150 = vmatprep.subr.mxu0 0.0
    %151 = vmatpush2.msra.mxu0 0.0
    %152 = vmatprep.subr.mxu0 0.0
    %153 = vmatpush2.msra.mxu0 0.0
    %154 = vmatprep.subr.mxu0 0.0
    %155 = vmatpush2.msra.mxu0 0.0
    %156 = vmatprep.subr.mxu0 0.0
    %157 = vmatpush2.msra.mxu0 0.0
    %158 = vmatprep.subr.mxu0 0.0
    %159 = vmatpush2.msra.mxu0 0.0
    %160 = vmatprep.subr.mxu0 0.0
    %161 = vmatpush2.msra.mxu0 0.0
    %162 = vmatprep.subr.mxu0 0.0
    %163 = vmatpush2.msra.mxu0 0.0
    %164 = vmatprep.mubr.f32.mxu0 0.0
    %165 = vmatmul.mubr.f32.gmra.mxu0 %v77
    %v166 = vpop.f32.mrf.mxu0
    %v167 = vadd.f32 %v73, %v166
    %v168 = vpop.f32.mrf.mxu0
    %169 = vmatprep.mubr.f32.mxu0 0.0
    %170 = vmatmul.mubr.f32.gmra.mxu0 %v80
    %v171 = vpop.f32.mrf.mxu0
    %v172 = vadd.f32 %v73, %v171
    %v173 = vpop.f32.mrf.mxu0
    %174 = vmatprep.mubr.f32.mxu0 0.0
    %175 = vmatmul.mubr.f32.gmra.mxu0 %v83
    %v176 = vpop.f32.mrf.mxu0
    %v177 = vadd.f32 %v73, %v176
    %v178 = vpop.f32.mrf.mxu0
    %179 = vmatprep.mubr.f32.mxu0 0.0
    %180 = vmatmul.mubr.f32.gmra.mxu0 %v86
    %v181 = vpop.f32.mrf.mxu0
    %v182 = vadd.f32 %v73, %v181
    %v183 = vpop.f32.mrf.mxu0
    %184 = vmatprep.mubr.f32.mxu0 0.0
    %185 = vmatmul.mubr.f32.gmra.mxu0 %v89
    %v186 = vpop.f32.mrf.mxu0
    %v187 = vadd.f32 %v73, %v186
    %v188 = vpop.f32.mrf.mxu0
    %189 = vmatprep.mubr.f32.mxu0 0.0
    %190 = vmatmul.mubr.f32.gmra.mxu0 %v92
    %v191 = vpop.f32.mrf.mxu0
    %v192 = vadd.f32 %v73, %v191
    %v193 = vpop.f32.mrf.mxu0
    %194 = vmatprep.mubr.f32.mxu0 0.0
    %195 = vmatmul.mubr.f32.gmra.mxu0 %v95
    %v196 = vpop.f32.mrf.mxu0
    %v197 = vadd.f32 %v73, %v196
    %v198 = vpop.f32.mrf.mxu0
    %199 = vmatprep.mubr.f32.mxu0 0.0
    %200 = vmatmul.mubr.f32.gmra.mxu0 %v98
    %v201 = vpop.f32.mrf.mxu0
    %v202 = vadd.f32 %v73, %v201
    %v203 = vpop.f32.mrf.mxu0
    %204 = vdwg.mxu0
    %v205 = vld [vmem:[#allocation2] sm:$0xff]
    %v206 = vld [vmem:[#allocation3] sm:$0xff]
    %v207 = vld [vmem:[%s2] sm:$0xff]
    %v208 = vld [vmem:[%s2 + $0x8] sm:$0xff]
    %v209 = vld [vmem:[%s2 + $0x10] sm:$0xff]
    %v210 = vld [vmem:[%s2 + $0x18] sm:$0xff]
    %vm211 = vcmask 261120
    %v213 = vsel %vm211, %v205, 0
    %215 = vmatprep.subr.mxu0 0.0
    %216 = vmatpush1.msra.mxu0 0.0
    %217 = vmatprep.subr.mxu0 0.0
    %218 = vmatpush1.msra.mxu0 0.0
    %219 = vmatprep.subr.mxu0 0.0
    %220 = vmatpush1.msra.mxu0 0.0
    %221 = vmatprep.subr.mxu0 0.0
    %222 = vmatpush1.msra.mxu0 0.0
    %223 = vmatprep.subr.mxu0 0.0
    %224 = vmatpush1.msra.mxu0 0.0
    %225 = vmatprep.subr.mxu0 0.0
    %226 = vmatpush1.msra.mxu0 0.0
    %227 = vmatprep.subr.mxu0 0.0
    %228 = vmatpush1.msra.mxu0 0.0
    %229 = vmatprep.subr.mxu0 0.0
    %230 = vmatpush1.msra.mxu0 0.0
    %231 = vmatprep.subr.mxu0 0.0
    %232 = vmatpush1.msra.mxu0 0.0
    %233 = vmatprep.subr.mxu0 0.0
    %234 = vmatpush1.msra.mxu0 0.0
    %235 = vmatprep.subr.mxu0 0.0
    %236 = vmatpush1.msra.mxu0 0.0
    %237 = vmatprep.subr.mxu0 0.0
    %238 = vmatpush1.msra.mxu0 0.0
    %239 = vmatprep.subr.mxu0 0.0
    %240 = vmatpush1.msra.mxu0 %v210
    %241 = vmatprep.subr.mxu0 0.0
    %242 = vmatpush1.msra.mxu0 %v209
    %243 = vmatprep.subr.mxu0 0.0
    %244 = vmatpush1.msra.mxu0 %v208
    %245 = vmatprep.subr.mxu0 0.0
    %246 = vmatpush1.msra.mxu0 %v207
    %247 = vmatprep.subr.mxu0 0.0
    %248 = vmatpush2.msra.mxu0 0.0
    %249 = vmatprep.subr.mxu0 0.0
    %250 = vmatpush2.msra.mxu0 0.0
    %251 = vmatprep.subr.mxu0 0.0
    %252 = vmatpush2.msra.mxu0 0.0
    %253 = vmatprep.subr.mxu0 0.0
    %254 = vmatpush2.msra.mxu0 0.0
    %255 = vmatprep.subr.mxu0 0.0
    %256 = vmatpush2.msra.mxu0 0.0
    %257 = vmatprep.subr.mxu0 0.0
    %258 = vmatpush2.msra.mxu0 0.0
    %259 = vmatprep.subr.mxu0 0.0
    %260 = vmatpush2.msra.mxu0 0.0
    %261 = vmatprep.subr.mxu0 0.0
    %262 = vmatpush2.msra.mxu0 0.0
    %263 = vmatprep.subr.mxu0 0.0
    %264 = vmatpush2.msra.mxu0 0.0
    %265 = vmatprep.subr.mxu0 0.0
    %266 = vmatpush2.msra.mxu0 0.0
    %267 = vmatprep.subr.mxu0 0.0
    %268 = vmatpush2.msra.mxu0 0.0
    %269 = vmatprep.subr.mxu0 0.0
    %270 = vmatpush2.msra.mxu0 0.0
    %271 = vmatprep.subr.mxu0 0.0
    %272 = vmatpush2.msra.mxu0 0.0
    %273 = vmatprep.subr.mxu0 0.0
    %274 = vmatpush2.msra.mxu0 0.0
    %275 = vmatprep.subr.mxu0 0.0
    %276 = vmatpush2.msra.mxu0 0.0
    %277 = vmatprep.subr.mxu0 0.0
    %278 = vmatpush2.msra.mxu0 0.0
    %279 = vmatprep.mubr.f32.mxu0 0.0
    %280 = vmatmul.mubr.f32.gmra.mxu0 %v213
    %v281 = vpop.f32.mrf.mxu0
    %v282 = vadd.f32 0.0, %v281
    %v283 = vpop.f32.mrf.mxu0
    %284 = vdwg.mxu0
    %v285 = vadd.f32 %v167, %v282
    %v286 = vxor.u32 %v285, 2147483648
    %v287 = vmul.f32 %v286, 1.442695
    %v288 = vpow.pop %v287
    %v289 = vadd.f32 %v288, 1.0
    %v290 = vrcp.pop %v289
    %v291 = vmul.f32 1.0, %v290
    %v292 = vtanh.pop %v285
    %294 = vrot.lane.b32.xlu0 %v206, 32
    %v295 = vpop.permute.xlu0 %294
    %v297 = vmul.f32 %v291, %v295
    %299 = vrot.lane.b32.xlu0 %v292, 64
    %v300 = vpop.permute.xlu0 %299
    %v302 = vmul.f32 %v291, %v300
    %304 = vrot.lane.b32.xlu0 %v302, 32
    %v305 = vpop.permute.xlu0 %304
    %v307 = vadd.f32 %v297, %v305
    %v308 = vtanh.pop %v307
    %310 = vrot.lane.b32.xlu0 %v308, 64
    %v311 = vpop.permute.xlu0 %310
    %v313 = vmul.f32 %v291, %v311
    %315 = vrot.lane.b32.xlu0 %v313, 32
    %v316 = vpop.permute.xlu0 %315
    %318 = vst.msk [vmem:[#allocation4] sm:$0xff] %vm211, %v316
    %v319 = vsel %vm211, %v316, 0
    %321 = vmatprep.subr.mxu0 0.0
    %322 = vmatpush1.msra.mxu0 0.0
    %323 = vmatprep.subr.mxu0 0.0
    %324 = vmatpush1.msra.mxu0 0.0
    %325 = vmatprep.subr.mxu0 0.0
    %326 = vmatpush1.msra.mxu0 0.0
    %327 = vmatprep.subr.mxu0 0.0
    %328 = vmatpush1.msra.mxu0 0.0
    %329 = vmatprep.subr.mxu0 0.0
    %330 = vmatpush1.msra.mxu0 0.0
    %331 = vmatprep.subr.mxu0 0.0
    %332 = vmatpush1.msra.mxu0 0.0
    %333 = vmatprep.subr.mxu0 0.0
    %334 = vmatpush1.msra.mxu0 0.0
    %335 = vmatprep.subr.mxu0 0.0
    %336 = vmatpush1.msra.mxu0 0.0
    %337 = vmatprep.subr.mxu0 0.0
    %338 = vmatpush1.msra.mxu0 0.0
    %339 = vmatprep.subr.mxu0 0.0
    %340 = vmatpush1.msra.mxu0 0.0
    %341 = vmatprep.subr.mxu0 0.0
    %342 = vmatpush1.msra.mxu0 0.0
    %343 = vmatprep.subr.mxu0 0.0
    %344 = vmatpush1.msra.mxu0 0.0
    %345 = vmatprep.subr.mxu0 0.0
    %346 = vmatpush1.msra.mxu0 %v210
    %347 = vmatprep.subr.mxu0 0.0
    %348 = vmatpush1.msra.mxu0 %v209
    %349 = vmatprep.subr.mxu0 0.0
    %350 = vmatpush1.msra.mxu0 %v208
    %351 = vmatprep.subr.mxu0 0.0
    %352 = vmatpush1.msra.mxu0 %v207
    %353 = vmatprep.subr.mxu0 0.0
    %354 = vmatpush2.msra.mxu0 0.0
    %355 = vmatprep.subr.mxu0 0.0
    %356 = vmatpush2.msra.mxu0 0.0
    %357 = vmatprep.subr.mxu0 0.0
    %358 = vmatpush2.msra.mxu0 0.0
    %359 = vmatprep.subr.mxu0 0.0
    %360 = vmatpush2.msra.mxu0 0.0
    %361 = vmatprep.subr.mxu0 0.0
    %362 = vmatpush2.msra.mxu0 0.0
    %363 = vmatprep.subr.mxu0 0.0
    %364 = vmatpush2.msra.mxu0 0.0
    %365 = vmatprep.subr.mxu0 0.0
    %366 = vmatpush2.msra.mxu0 0.0
    %367 = vmatprep.subr.mxu0 0.0
    %368 = vmatpush2.msra.mxu0 0.0
    %369 = vmatprep.subr.mxu0 0.0
    %370 = vmatpush2.msra.mxu0 0.0
    %371 = vmatprep.subr.mxu0 0.0
    %372 = vmatpush2.msra.mxu0 0.0
    %373 = vmatprep.subr.mxu0 0.0
    %374 = vmatpush2.msra.mxu0 0.0
    %375 = vmatprep.subr.mxu0 0.0
    %376 = vmatpush2.msra.mxu0 0.0
    %377 = vmatprep.subr.mxu0 0.0
    %378 = vmatpush2.msra.mxu0 0.0
    %379 = vmatprep.subr.mxu0 0.0
    %380 = vmatpush2.msra.mxu0 0.0
    %381 = vmatprep.subr.mxu0 0.0
    %382 = vmatpush2.msra.mxu0 0.0
    %383 = vmatprep.subr.mxu0 0.0
    %384 = vmatpush2.msra.mxu0 0.0
    %385 = vmatprep.mubr.f32.mxu0 0.0
    %386 = vmatmul.mubr.f32.gmra.mxu0 %v319
    %v387 = vpop.f32.mrf.mxu0
    %v388 = vadd.f32 0.0, %v387
    %v389 = vpop.f32.mrf.mxu0
    %390 = vdwg.mxu0
    %v391 = vadd.f32 %v172, %v388
    %v392 = vxor.u32 %v391, 2147483648
    %v393 = vmul.f32 %v392, 1.442695
    %v394 = vpow.pop %v393
    %v395 = vadd.f32 %v394, 1.0
    %v396 = vrcp.pop %v395
    %v397 = vmul.f32 1.0, %v396
    %v398 = vtanh.pop %v391
    %v399 = vmul.f32 %v397, %v307
    %401 = vrot.lane.b32.xlu0 %v398, 64
    %v402 = vpop.permute.xlu0 %401
    %v404 = vmul.f32 %v397, %v402
    %406 = vrot.lane.b32.xlu0 %v404, 32
    %v407 = vpop.permute.xlu0 %406
    %v409 = vadd.f32 %v399, %v407
    %v410 = vtanh.pop %v409
    %412 = vrot.lane.b32.xlu0 %v410, 64
    %v413 = vpop.permute.xlu0 %412
    %v415 = vmul.f32 %v397, %v413
    %417 = vrot.lane.b32.xlu0 %v415, 32
    %v418 = vpop.permute.xlu0 %417
    %420 = vst.msk [vmem:[#allocation4 + $0x8] sm:$0xff] %vm211, %v418
    %v421 = vsel %vm211, %v418, 0
    %423 = vmatprep.subr.mxu0 0.0
    %424 = vmatpush1.msra.mxu0 0.0
    %425 = vmatprep.subr.mxu0 0.0
    %426 = vmatpush1.msra.mxu0 0.0
    %427 = vmatprep.subr.mxu0 0.0
    %428 = vmatpush1.msra.mxu0 0.0
    %429 = vmatprep.subr.mxu0 0.0
    %430 = vmatpush1.msra.mxu0 0.0
    %431 = vmatprep.subr.mxu0 0.0
    %432 = vmatpush1.msra.mxu0 0.0
    %433 = vmatprep.subr.mxu0 0.0
    %434 = vmatpush1.msra.mxu0 0.0
    %435 = vmatprep.subr.mxu0 0.0
    %436 = vmatpush1.msra.mxu0 0.0
    %437 = vmatprep.subr.mxu0 0.0
    %438 = vmatpush1.msra.mxu0 0.0
    %439 = vmatprep.subr.mxu0 0.0
    %440 = vmatpush1.msra.mxu0 0.0
    %441 = vmatprep.subr.mxu0 0.0
    %442 = vmatpush1.msra.mxu0 0.0
    %443 = vmatprep.subr.mxu0 0.0
    %444 = vmatpush1.msra.mxu0 0.0
    %445 = vmatprep.subr.mxu0 0.0
    %446 = vmatpush1.msra.mxu0 0.0
    %447 = vmatprep.subr.mxu0 0.0
    %448 = vmatpush1.msra.mxu0 %v210
    %449 = vmatprep.subr.mxu0 0.0
    %450 = vmatpush1.msra.mxu0 %v209
    %451 = vmatprep.subr.mxu0 0.0
    %452 = vmatpush1.msra.mxu0 %v208
    %453 = vmatprep.subr.mxu0 0.0
    %454 = vmatpush1.msra.mxu0 %v207
    %455 = vmatprep.subr.mxu0 0.0
    %456 = vmatpush2.msra.mxu0 0.0
    %457 = vmatprep.subr.mxu0 0.0
    %458 = vmatpush2.msra.mxu0 0.0
    %459 = vmatprep.subr.mxu0 0.0
    %460 = vmatpush2.msra.mxu0 0.0
    %461 = vmatprep.subr.mxu0 0.0
    %462 = vmatpush2.msra.mxu0 0.0
    %463 = vmatprep.subr.mxu0 0.0
    %464 = vmatpush2.msra.mxu0 0.0
    %465 = vmatprep.subr.mxu0 0.0
    %466 = vmatpush2.msra.mxu0 0.0
    %467 = vmatprep.subr.mxu0 0.0
    %468 = vmatpush2.msra.mxu0 0.0
    %469 = vmatprep.subr.mxu0 0.0
    %470 = vmatpush2.msra.mxu0 0.0
    %471 = vmatprep.subr.mxu0 0.0
    %472 = vmatpush2.msra.mxu0 0.0
    %473 = vmatprep.subr.mxu0 0.0
    %474 = vmatpush2.msra.mxu0 0.0
    %475 = vmatprep.subr.mxu0 0.0
    %476 = vmatpush2.msra.mxu0 0.0
    %477 = vmatprep.subr.mxu0 0.0
    %478 = vmatpush2.msra.mxu0 0.0
    %479 = vmatprep.subr.mxu0 0.0
    %480 = vmatpush2.msra.mxu0 0.0
    %481 = vmatprep.subr.mxu0 0.0
    %482 = vmatpush2.msra.mxu0 0.0
    %483 = vmatprep.subr.mxu0 0.0
    %484 = vmatpush2.msra.mxu0 0.0
    %485 = vmatprep.subr.mxu0 0.0
    %486 = vmatpush2.msra.mxu0 0.0
    %487 = vmatprep.mubr.f32.mxu0 0.0
    %488 = vmatmul.mubr.f32.gmra.mxu0 %v421
    %v489 = vpop.f32.mrf.mxu0
    %v490 = vadd.f32 0.0, %v489
    %v491 = vpop.f32.mrf.mxu0
    %492 = vdwg.mxu0
    %v493 = vadd.f32 %v177, %v490
    %v494 = vxor.u32 %v493, 2147483648
    %v495 = vmul.f32 %v494, 1.442695
    %v496 = vpow.pop %v495
    %v497 = vadd.f32 %v496, 1.0
    %v498 = vrcp.pop %v497
    %v499 = vmul.f32 1.0, %v498
    %v500 = vtanh.pop %v493
    %v501 = vmul.f32 %v499, %v409
    %503 = vrot.lane.b32.xlu0 %v500, 64
    %v504 = vpop.permute.xlu0 %503
    %v506 = vmul.f32 %v499, %v504
    %508 = vrot.lane.b32.xlu0 %v506, 32
    %v509 = vpop.permute.xlu0 %508
    %v511 = vadd.f32 %v501, %v509
    %v512 = vtanh.pop %v511
    %514 = vrot.lane.b32.xlu0 %v512, 64
    %v515 = vpop.permute.xlu0 %514
    %v517 = vmul.f32 %v499, %v515
    %519 = vrot.lane.b32.xlu0 %v517, 32
    %v520 = vpop.permute.xlu0 %519
    %522 = vst.msk [vmem:[#allocation4 + $0x10] sm:$0xff] %vm211, %v520
    %v523 = vsel %vm211, %v520, 0
    %525 = vmatprep.subr.mxu0 0.0
    %526 = vmatpush1.msra.mxu0 0.0
    %527 = vmatprep.subr.mxu0 0.0
    %528 = vmatpush1.msra.mxu0 0.0
    %529 = vmatprep.subr.mxu0 0.0
    %530 = vmatpush1.msra.mxu0 0.0
    %531 = vmatprep.subr.mxu0 0.0
    %532 = vmatpush1.msra.mxu0 0.0
    %533 = vmatprep.subr.mxu0 0.0
    %534 = vmatpush1.msra.mxu0 0.0
    %535 = vmatprep.subr.mxu0 0.0
    %536 = vmatpush1.msra.mxu0 0.0
    %537 = vmatprep.subr.mxu0 0.0
    %538 = vmatpush1.msra.mxu0 0.0
    %539 = vmatprep.subr.mxu0 0.0
    %540 = vmatpush1.msra.mxu0 0.0
    %541 = vmatprep.subr.mxu0 0.0
    %542 = vmatpush1.msra.mxu0 0.0
    %543 = vmatprep.subr.mxu0 0.0
    %544 = vmatpush1.msra.mxu0 0.0
    %545 = vmatprep.subr.mxu0 0.0
    %546 = vmatpush1.msra.mxu0 0.0
    %547 = vmatprep.subr.mxu0 0.0
    %548 = vmatpush1.msra.mxu0 0.0
    %549 = vmatprep.subr.mxu0 0.0
    %550 = vmatpush1.msra.mxu0 %v210
    %551 = vmatprep.subr.mxu0 0.0
    %552 = vmatpush1.msra.mxu0 %v209
    %553 = vmatprep.subr.mxu0 0.0
    %554 = vmatpush1.msra.mxu0 %v208
    %555 = vmatprep.subr.mxu0 0.0
    %556 = vmatpush1.msra.mxu0 %v207
    %557 = vmatprep.subr.mxu0 0.0
    %558 = vmatpush2.msra.mxu0 0.0
    %559 = vmatprep.subr.mxu0 0.0
    %560 = vmatpush2.msra.mxu0 0.0
    %561 = vmatprep.subr.mxu0 0.0
    %562 = vmatpush2.msra.mxu0 0.0
    %563 = vmatprep.subr.mxu0 0.0
    %564 = vmatpush2.msra.mxu0 0.0
    %565 = vmatprep.subr.mxu0 0.0
    %566 = vmatpush2.msra.mxu0 0.0
    %567 = vmatprep.subr.mxu0 0.0
    %568 = vmatpush2.msra.mxu0 0.0
    %569 = vmatprep.subr.mxu0 0.0
    %570 = vmatpush2.msra.mxu0 0.0
    %571 = vmatprep.subr.mxu0 0.0
    %572 = vmatpush2.msra.mxu0 0.0
    %573 = vmatprep.subr.mxu0 0.0
    %574 = vmatpush2.msra.mxu0 0.0
    %575 = vmatprep.subr.mxu0 0.0
    %576 = vmatpush2.msra.mxu0 0.0
    %577 = vmatprep.subr.mxu0 0.0
    %578 = vmatpush2.msra.mxu0 0.0
    %579 = vmatprep.subr.mxu0 0.0
    %580 = vmatpush2.msra.mxu0 0.0
    %581 = vmatprep.subr.mxu0 0.0
    %582 = vmatpush2.msra.mxu0 0.0
    %583 = vmatprep.subr.mxu0 0.0
    %584 = vmatpush2.msra.mxu0 0.0
    %585 = vmatprep.subr.mxu0 0.0
    %586 = vmatpush2.msra.mxu0 0.0
    %587 = vmatprep.subr.mxu0 0.0
    %588 = vmatpush2.msra.mxu0 0.0
    %589 = vmatprep.mubr.f32.mxu0 0.0
    %590 = vmatmul.mubr.f32.gmra.mxu0 %v523
    %v591 = vpop.f32.mrf.mxu0
    %v592 = vadd.f32 0.0, %v591
    %v593 = vpop.f32.mrf.mxu0
    %594 = vdwg.mxu0
    %v595 = vadd.f32 %v182, %v592
    %v596 = vxor.u32 %v595, 2147483648
    %v597 = vmul.f32 %v596, 1.442695
    %v598 = vpow.pop %v597
    %v599 = vadd.f32 %v598, 1.0
    %v600 = vrcp.pop %v599
    %v601 = vmul.f32 1.0, %v600
    %v602 = vtanh.pop %v595
    %v603 = vmul.f32 %v601, %v511
    %605 = vrot.lane.b32.xlu0 %v602, 64
    %v606 = vpop.permute.xlu0 %605
    %v608 = vmul.f32 %v601, %v606
    %610 = vrot.lane.b32.xlu0 %v608, 32
    %v611 = vpop.permute.xlu0 %610
    %v613 = vadd.f32 %v603, %v611
    %v614 = vtanh.pop %v613
    %616 = vrot.lane.b32.xlu0 %v614, 64
    %v617 = vpop.permute.xlu0 %616
    %v619 = vmul.f32 %v601, %v617
    %621 = vrot.lane.b32.xlu0 %v619, 32
    %v622 = vpop.permute.xlu0 %621
    %624 = vst.msk [vmem:[#allocation4 + $0x18] sm:$0xff] %vm211, %v622
    %v625 = vsel %vm211, %v622, 0
    %627 = vmatprep.subr.mxu0 0.0
    %628 = vmatpush1.msra.mxu0 0.0
    %629 = vmatprep.subr.mxu0 0.0
    %630 = vmatpush1.msra.mxu0 0.0
    %631 = vmatprep.subr.mxu0 0.0
    %632 = vmatpush1.msra.mxu0 0.0
    %633 = vmatprep.subr.mxu0 0.0
    %634 = vmatpush1.msra.mxu0 0.0
    %635 = vmatprep.subr.mxu0 0.0
    %636 = vmatpush1.msra.mxu0 0.0
    %637 = vmatprep.subr.mxu0 0.0
    %638 = vmatpush1.msra.mxu0 0.0
    %639 = vmatprep.subr.mxu0 0.0
    %640 = vmatpush1.msra.mxu0 0.0
    %641 = vmatprep.subr.mxu0 0.0
    %642 = vmatpush1.msra.mxu0 0.0
    %643 = vmatprep.subr.mxu0 0.0
    %644 = vmatpush1.msra.mxu0 0.0
    %645 = vmatprep.subr.mxu0 0.0
    %646 = vmatpush1.msra.mxu0 0.0
    %647 = vmatprep.subr.mxu0 0.0
    %648 = vmatpush1.msra.mxu0 0.0
    %649 = vmatprep.subr.mxu0 0.0
    %650 = vmatpush1.msra.mxu0 0.0
    %651 = vmatprep.subr.mxu0 0.0
    %652 = vmatpush1.msra.mxu0 %v210
    %653 = vmatprep.subr.mxu0 0.0
    %654 = vmatpush1.msra.mxu0 %v209
    %655 = vmatprep.subr.mxu0 0.0
    %656 = vmatpush1.msra.mxu0 %v208
    %657 = vmatprep.subr.mxu0 0.0
    %658 = vmatpush1.msra.mxu0 %v207
    %659 = vmatprep.subr.mxu0 0.0
    %660 = vmatpush2.msra.mxu0 0.0
    %661 = vmatprep.subr.mxu0 0.0
    %662 = vmatpush2.msra.mxu0 0.0
    %663 = vmatprep.subr.mxu0 0.0
    %664 = vmatpush2.msra.mxu0 0.0
    %665 = vmatprep.subr.mxu0 0.0
    %666 = vmatpush2.msra.mxu0 0.0
    %667 = vmatprep.subr.mxu0 0.0
    %668 = vmatpush2.msra.mxu0 0.0
    %669 = vmatprep.subr.mxu0 0.0
    %670 = vmatpush2.msra.mxu0 0.0
    %671 = vmatprep.subr.mxu0 0.0
    %672 = vmatpush2.msra.mxu0 0.0
    %673 = vmatprep.subr.mxu0 0.0
    %674 = vmatpush2.msra.mxu0 0.0
    %675 = vmatprep.subr.mxu0 0.0
    %676 = vmatpush2.msra.mxu0 0.0
    %677 = vmatprep.subr.mxu0 0.0
    %678 = vmatpush2.msra.mxu0 0.0
    %679 = vmatprep.subr.mxu0 0.0
    %680 = vmatpush2.msra.mxu0 0.0
    %681 = vmatprep.subr.mxu0 0.0
    %682 = vmatpush2.msra.mxu0 0.0
    %683 = vmatprep.subr.mxu0 0.0
    %684 = vmatpush2.msra.mxu0 0.0
    %685 = vmatprep.subr.mxu0 0.0
    %686 = vmatpush2.msra.mxu0 0.0
    %687 = vmatprep.subr.mxu0 0.0
    %688 = vmatpush2.msra.mxu0 0.0
    %689 = vmatprep.subr.mxu0 0.0
    %690 = vmatpush2.msra.mxu0 0.0
    %691 = vmatprep.mubr.f32.mxu0 0.0
    %692 = vmatmul.mubr.f32.gmra.mxu0 %v625
    %v693 = vpop.f32.mrf.mxu0
    %v694 = vadd.f32 0.0, %v693
    %v695 = vpop.f32.mrf.mxu0
    %696 = vdwg.mxu0
    %v697 = vadd.f32 %v187, %v694
    %v698 = vxor.u32 %v697, 2147483648
    %v699 = vmul.f32 %v698, 1.442695
    %v700 = vpow.pop %v699
    %v701 = vadd.f32 %v700, 1.0
    %v702 = vrcp.pop %v701
    %v703 = vmul.f32 1.0, %v702
    %v704 = vtanh.pop %v697
    %v705 = vmul.f32 %v703, %v613
    %707 = vrot.lane.b32.xlu0 %v704, 64
    %v708 = vpop.permute.xlu0 %707
    %v710 = vmul.f32 %v703, %v708
    %712 = vrot.lane.b32.xlu0 %v710, 32
    %v713 = vpop.permute.xlu0 %712
    %v715 = vadd.f32 %v705, %v713
    %v716 = vtanh.pop %v715
    %718 = vrot.lane.b32.xlu0 %v716, 64
    %v719 = vpop.permute.xlu0 %718
    %v721 = vmul.f32 %v703, %v719
    %723 = vrot.lane.b32.xlu0 %v721, 32
    %v724 = vpop.permute.xlu0 %723
    %726 = vst.msk [vmem:[#allocation4 + $0x20] sm:$0xff] %vm211, %v724
    %v727 = vsel %vm211, %v724, 0
    %729 = vmatprep.subr.mxu0 0.0
    %730 = vmatpush1.msra.mxu0 0.0
    %731 = vmatprep.subr.mxu0 0.0
    %732 = vmatpush1.msra.mxu0 0.0
    %733 = vmatprep.subr.mxu0 0.0
    %734 = vmatpush1.msra.mxu0 0.0
    %735 = vmatprep.subr.mxu0 0.0
    %736 = vmatpush1.msra.mxu0 0.0
    %737 = vmatprep.subr.mxu0 0.0
    %738 = vmatpush1.msra.mxu0 0.0
    %739 = vmatprep.subr.mxu0 0.0
    %740 = vmatpush1.msra.mxu0 0.0
    %741 = vmatprep.subr.mxu0 0.0
    %742 = vmatpush1.msra.mxu0 0.0
    %743 = vmatprep.subr.mxu0 0.0
    %744 = vmatpush1.msra.mxu0 0.0
    %745 = vmatprep.subr.mxu0 0.0
    %746 = vmatpush1.msra.mxu0 0.0
    %747 = vmatprep.subr.mxu0 0.0
    %748 = vmatpush1.msra.mxu0 0.0
    %749 = vmatprep.subr.mxu0 0.0
    %750 = vmatpush1.msra.mxu0 0.0
    %751 = vmatprep.subr.mxu0 0.0
    %752 = vmatpush1.msra.mxu0 0.0
    %753 = vmatprep.subr.mxu0 0.0
    %754 = vmatpush1.msra.mxu0 %v210
    %755 = vmatprep.subr.mxu0 0.0
    %756 = vmatpush1.msra.mxu0 %v209
    %757 = vmatprep.subr.mxu0 0.0
    %758 = vmatpush1.msra.mxu0 %v208
    %759 = vmatprep.subr.mxu0 0.0
    %760 = vmatpush1.msra.mxu0 %v207
    %761 = vmatprep.subr.mxu0 0.0
    %762 = vmatpush2.msra.mxu0 0.0
    %763 = vmatprep.subr.mxu0 0.0
    %764 = vmatpush2.msra.mxu0 0.0
    %765 = vmatprep.subr.mxu0 0.0
    %766 = vmatpush2.msra.mxu0 0.0
    %767 = vmatprep.subr.mxu0 0.0
    %768 = vmatpush2.msra.mxu0 0.0
    %769 = vmatprep.subr.mxu0 0.0
    %770 = vmatpush2.msra.mxu0 0.0
    %771 = vmatprep.subr.mxu0 0.0
    %772 = vmatpush2.msra.mxu0 0.0
    %773 = vmatprep.subr.mxu0 0.0
    %774 = vmatpush2.msra.mxu0 0.0
    %775 = vmatprep.subr.mxu0 0.0
    %776 = vmatpush2.msra.mxu0 0.0
    %777 = vmatprep.subr.mxu0 0.0
    %778 = vmatpush2.msra.mxu0 0.0
    %779 = vmatprep.subr.mxu0 0.0
    %780 = vmatpush2.msra.mxu0 0.0
    %781 = vmatprep.subr.mxu0 0.0
    %782 = vmatpush2.msra.mxu0 0.0
    %783 = vmatprep.subr.mxu0 0.0
    %784 = vmatpush2.msra.mxu0 0.0
    %785 = vmatprep.subr.mxu0 0.0
    %786 = vmatpush2.msra.mxu0 0.0
    %787 = vmatprep.subr.mxu0 0.0
    %788 = vmatpush2.msra.mxu0 0.0
    %789 = vmatprep.subr.mxu0 0.0
    %790 = vmatpush2.msra.mxu0 0.0
    %791 = vmatprep.subr.mxu0 0.0
    %792 = vmatpush2.msra.mxu0 0.0
    %793 = vmatprep.mubr.f32.mxu0 0.0
    %794 = vmatmul.mubr.f32.gmra.mxu0 %v727
    %v795 = vpop.f32.mrf.mxu0
    %v796 = vadd.f32 0.0, %v795
    %v797 = vpop.f32.mrf.mxu0
    %798 = vdwg.mxu0
    %v799 = vadd.f32 %v192, %v796
    %v800 = vxor.u32 %v799, 2147483648
    %v801 = vmul.f32 %v800, 1.442695
    %v802 = vpow.pop %v801
    %v803 = vadd.f32 %v802, 1.0
    %v804 = vrcp.pop %v803
    %v805 = vmul.f32 1.0, %v804
    %v806 = vtanh.pop %v799
    %v807 = vmul.f32 %v805, %v715
    %809 = vrot.lane.b32.xlu0 %v806, 64
    %v810 = vpop.permute.xlu0 %809
    %v812 = vmul.f32 %v805, %v810
    %814 = vrot.lane.b32.xlu0 %v812, 32
    %v815 = vpop.permute.xlu0 %814
    %v817 = vadd.f32 %v807, %v815
    %v818 = vtanh.pop %v817
    %820 = vrot.lane.b32.xlu0 %v818, 64
    %v821 = vpop.permute.xlu0 %820
    %v823 = vmul.f32 %v805, %v821
    %825 = vrot.lane.b32.xlu0 %v823, 32
    %v826 = vpop.permute.xlu0 %825
    %828 = vst.msk [vmem:[#allocation4 + $0x28] sm:$0xff] %vm211, %v826
    %v829 = vsel %vm211, %v826, 0
    %831 = vmatprep.subr.mxu0 0.0
    %832 = vmatpush1.msra.mxu0 0.0
    %833 = vmatprep.subr.mxu0 0.0
    %834 = vmatpush1.msra.mxu0 0.0
    %835 = vmatprep.subr.mxu0 0.0
    %836 = vmatpush1.msra.mxu0 0.0
    %837 = vmatprep.subr.mxu0 0.0
    %838 = vmatpush1.msra.mxu0 0.0
    %839 = vmatprep.subr.mxu0 0.0
    %840 = vmatpush1.msra.mxu0 0.0
    %841 = vmatprep.subr.mxu0 0.0
    %842 = vmatpush1.msra.mxu0 0.0
    %843 = vmatprep.subr.mxu0 0.0
    %844 = vmatpush1.msra.mxu0 0.0
    %845 = vmatprep.subr.mxu0 0.0
    %846 = vmatpush1.msra.mxu0 0.0
    %847 = vmatprep.subr.mxu0 0.0
    %848 = vmatpush1.msra.mxu0 0.0
    %849 = vmatprep.subr.mxu0 0.0
    %850 = vmatpush1.msra.mxu0 0.0
    %851 = vmatprep.subr.mxu0 0.0
    %852 = vmatpush1.msra.mxu0 0.0
    %853 = vmatprep.subr.mxu0 0.0
    %854 = vmatpush1.msra.mxu0 0.0
    %855 = vmatprep.subr.mxu0 0.0
    %856 = vmatpush1.msra.mxu0 %v210
    %857 = vmatprep.subr.mxu0 0.0
    %858 = vmatpush1.msra.mxu0 %v209
    %859 = vmatprep.subr.mxu0 0.0
    %860 = vmatpush1.msra.mxu0 %v208
    %861 = vmatprep.subr.mxu0 0.0
    %862 = vmatpush1.msra.mxu0 %v207
    %863 = vmatprep.subr.mxu0 0.0
    %864 = vmatpush2.msra.mxu0 0.0
    %865 = vmatprep.subr.mxu0 0.0
    %866 = vmatpush2.msra.mxu0 0.0
    %867 = vmatprep.subr.mxu0 0.0
    %868 = vmatpush2.msra.mxu0 0.0
    %869 = vmatprep.subr.mxu0 0.0
    %870 = vmatpush2.msra.mxu0 0.0
    %871 = vmatprep.subr.mxu0 0.0
    %872 = vmatpush2.msra.mxu0 0.0
    %873 = vmatprep.subr.mxu0 0.0
    %874 = vmatpush2.msra.mxu0 0.0
    %875 = vmatprep.subr.mxu0 0.0
    %876 = vmatpush2.msra.mxu0 0.0
    %877 = vmatprep.subr.mxu0 0.0
    %878 = vmatpush2.msra.mxu0 0.0
    %879 = vmatprep.subr.mxu0 0.0
    %880 = vmatpush2.msra.mxu0 0.0
    %881 = vmatprep.subr.mxu0 0.0
    %882 = vmatpush2.msra.mxu0 0.0
    %883 = vmatprep.subr.mxu0 0.0
    %884 = vmatpush2.msra.mxu0 0.0
    %885 = vmatprep.subr.mxu0 0.0
    %886 = vmatpush2.msra.mxu0 0.0
    %887 = vmatprep.subr.mxu0 0.0
    %888 = vmatpush2.msra.mxu0 0.0
    %889 = vmatprep.subr.mxu0 0.0
    %890 = vmatpush2.msra.mxu0 0.0
    %891 = vmatprep.subr.mxu0 0.0
    %892 = vmatpush2.msra.mxu0 0.0
    %893 = vmatprep.subr.mxu0 0.0
    %894 = vmatpush2.msra.mxu0 0.0
    %895 = vmatprep.mubr.f32.mxu0 0.0
    %896 = vmatmul.mubr.f32.gmra.mxu0 %v829
    %v897 = vpop.f32.mrf.mxu0
    %v898 = vadd.f32 0.0, %v897
    %v899 = vpop.f32.mrf.mxu0
    %900 = vdwg.mxu0
    %v901 = vadd.f32 %v197, %v898
    %v902 = vxor.u32 %v901, 2147483648
    %v903 = vmul.f32 %v902, 1.442695
    %v904 = vpow.pop %v903
    %v905 = vadd.f32 %v904, 1.0
    %v906 = vrcp.pop %v905
    %v907 = vmul.f32 1.0, %v906
    %v908 = vtanh.pop %v901
    %v909 = vmul.f32 %v907, %v817
    %911 = vrot.lane.b32.xlu0 %v908, 64
    %v912 = vpop.permute.xlu0 %911
    %v914 = vmul.f32 %v907, %v912
    %916 = vrot.lane.b32.xlu0 %v914, 32
    %v917 = vpop.permute.xlu0 %916
    %v919 = vadd.f32 %v909, %v917
    %v920 = vtanh.pop %v919
    %922 = vrot.lane.b32.xlu0 %v920, 64
    %v923 = vpop.permute.xlu0 %922
    %v925 = vmul.f32 %v907, %v923
    %927 = vrot.lane.b32.xlu0 %v925, 32
    %v928 = vpop.permute.xlu0 %927
    %930 = vst.msk [vmem:[#allocation4 + $0x30] sm:$0xff] %vm211, %v928
    %v931 = vsel %vm211, %v928, 0
    %933 = vmatprep.subr.mxu0 0.0
    %934 = vmatpush1.msra.mxu0 0.0
    %935 = vmatprep.subr.mxu0 0.0
    %936 = vmatpush1.msra.mxu0 0.0
    %937 = vmatprep.subr.mxu0 0.0
    %938 = vmatpush1.msra.mxu0 0.0
    %939 = vmatprep.subr.mxu0 0.0
    %940 = vmatpush1.msra.mxu0 0.0
    %941 = vmatprep.subr.mxu0 0.0
    %942 = vmatpush1.msra.mxu0 0.0
    %943 = vmatprep.subr.mxu0 0.0
    %944 = vmatpush1.msra.mxu0 0.0
    %945 = vmatprep.subr.mxu0 0.0
    %946 = vmatpush1.msra.mxu0 0.0
    %947 = vmatprep.subr.mxu0 0.0
    %948 = vmatpush1.msra.mxu0 0.0
    %949 = vmatprep.subr.mxu0 0.0
    %950 = vmatpush1.msra.mxu0 0.0
    %951 = vmatprep.subr.mxu0 0.0
    %952 = vmatpush1.msra.mxu0 0.0
    %953 = vmatprep.subr.mxu0 0.0
    %954 = vmatpush1.msra.mxu0 0.0
    %955 = vmatprep.subr.mxu0 0.0
    %956 = vmatpush1.msra.mxu0 0.0
    %957 = vmatprep.subr.mxu0 0.0
    %958 = vmatpush1.msra.mxu0 %v210
    %959 = vmatprep.subr.mxu0 0.0
    %960 = vmatpush1.msra.mxu0 %v209
    %961 = vmatprep.subr.mxu0 0.0
    %962 = vmatpush1.msra.mxu0 %v208
    %963 = vmatprep.subr.mxu0 0.0
    %964 = vmatpush1.msra.mxu0 %v207
    %965 = vmatprep.subr.mxu0 0.0
    %966 = vmatpush2.msra.mxu0 0.0
    %967 = vmatprep.subr.mxu0 0.0
    %968 = vmatpush2.msra.mxu0 0.0
    %969 = vmatprep.subr.mxu0 0.0
    %970 = vmatpush2.msra.mxu0 0.0
    %971 = vmatprep.subr.mxu0 0.0
    %972 = vmatpush2.msra.mxu0 0.0
    %973 = vmatprep.subr.mxu0 0.0
    %974 = vmatpush2.msra.mxu0 0.0
    %975 = vmatprep.subr.mxu0 0.0
    %976 = vmatpush2.msra.mxu0 0.0
    %977 = vmatprep.subr.mxu0 0.0
    %978 = vmatpush2.msra.mxu0 0.0
    %979 = vmatprep.subr.mxu0 0.0
    %980 = vmatpush2.msra.mxu0 0.0
    %981 = vmatprep.subr.mxu0 0.0
    %982 = vmatpush2.msra.mxu0 0.0
    %983 = vmatprep.subr.mxu0 0.0
    %984 = vmatpush2.msra.mxu0 0.0
    %985 = vmatprep.subr.mxu0 0.0
    %986 = vmatpush2.msra.mxu0 0.0
    %987 = vmatprep.subr.mxu0 0.0
    %988 = vmatpush2.msra.mxu0 0.0
    %989 = vmatprep.subr.mxu0 0.0
    %990 = vmatpush2.msra.mxu0 0.0
    %991 = vmatprep.subr.mxu0 0.0
    %992 = vmatpush2.msra.mxu0 0.0
    %993 = vmatprep.subr.mxu0 0.0
    %994 = vmatpush2.msra.mxu0 0.0
    %995 = vmatprep.subr.mxu0 0.0
    %996 = vmatpush2.msra.mxu0 0.0
    %997 = vmatprep.mubr.f32.mxu0 0.0
    %998 = vmatmul.mubr.f32.gmra.mxu0 %v931
    %v999 = vpop.f32.mrf.mxu0
    %v1000 = vadd.f32 0.0, %v999
    %v1001 = vpop.f32.mrf.mxu0
    %1002 = vdwg.mxu0
    %v1003 = vadd.f32 %v202, %v1000
    %v1004 = vxor.u32 %v1003, 2147483648
    %v1005 = vmul.f32 %v1004, 1.442695
    %v1006 = vpow.pop %v1005
    %v1007 = vadd.f32 %v1006, 1.0
    %v1008 = vrcp.pop %v1007
    %v1009 = vmul.f32 1.0, %v1008
    %v1010 = vtanh.pop %v1003
    %v1011 = vmul.f32 %v1009, %v919
    %1013 = vrot.lane.b32.xlu0 %v1010, 64
    %v1014 = vpop.permute.xlu0 %1013
    %v1016 = vmul.f32 %v1009, %v1014
    %1018 = vrot.lane.b32.xlu0 %v1016, 32
    %v1019 = vpop.permute.xlu0 %1018
    %v1021 = vadd.f32 %v1011, %v1019
    %v1022 = vtanh.pop %v1021
    %1024 = vrot.lane.b32.xlu0 %v1022, 64
    %v1025 = vpop.permute.xlu0 %1024
    %v1027 = vmul.f32 %v1009, %v1025
    %1029 = vrot.lane.b32.xlu0 %v1027, 32
    %v1030 = vpop.permute.xlu0 %1029
    %1032 = vst.msk [vmem:[#allocation4 + $0x38] sm:$0xff] %vm211, %v1030
    %1033 = vst.msk [vmem:[#allocation2] sm:$0xff] %vm211, %v1030
    %1035 = vrot.lane.b32.xlu0 %v1021, 96
    %v1036 = vpop.permute.xlu0 %1035
    %1038 = vst.msk [vmem:[#allocation3] sm:$0xff] %vm211, %v1036
    %v1039 = vld [vmem:[#allocation4] sm:$0xff]
    %v1040 = vld [vmem:[#allocation4 + $0x8] sm:$0xff]
    %v1041 = vld [vmem:[#allocation4 + $0x10] sm:$0xff]
    %v1042 = vld [vmem:[#allocation4 + $0x18] sm:$0xff]
    %v1043 = vld [vmem:[#allocation4 + $0x20] sm:$0xff]
    %v1044 = vld [vmem:[#allocation4 + $0x28] sm:$0xff]
    %v1045 = vld [vmem:[#allocation4 + $0x30] sm:$0xff]
    %v1046 = vld [vmem:[#allocation4 + $0x38] sm:$0xff]
    %v1047 = vld [vmem:[%s4] sm:$0xff]
    %v1048 = vld [vmem:[%s4 + $0x8] sm:$0xff]
    %v1049 = vld [vmem:[%s4 + $0x10] sm:$0xff]
    %v1050 = vld [vmem:[%s4 + $0x18] sm:$0xff]
    %v1051 = vld [vmem:[%s5] sm:$0x1]
    %v1053 = vlaneseq
    %v1054 = vshrl.u32 %v1053, 7
    %v1055 = vsub.s32 0, %v1054
    %v1056 = vrot.slane %v1051, %v1055
    %v1059 = vsel %vm211, %v1039, 0
    %v1062 = vsel %vm211, %v1040, 0
    %v1065 = vsel %vm211, %v1041, 0
    %v1068 = vsel %vm211, %v1042, 0
    %v1071 = vsel %vm211, %v1043, 0
    %v1074 = vsel %vm211, %v1044, 0
    %v1077 = vsel %vm211, %v1045, 0
    %v1080 = vsel %vm211, %v1046, 0
    %1082 = vmatprep.subr.mxu0 0.0
    %1083 = vmatpush1.msra.mxu0 0.0
    %1084 = vmatprep.subr.mxu0 0.0
    %1085 = vmatpush1.msra.mxu0 0.0
    %1086 = vmatprep.subr.mxu0 0.0
    %1087 = vmatpush1.msra.mxu0 0.0
    %1088 = vmatprep.subr.mxu0 0.0
    %1089 = vmatpush1.msra.mxu0 0.0
    %1090 = vmatprep.subr.mxu0 0.0
    %1091 = vmatpush1.msra.mxu0 0.0
    %1092 = vmatprep.subr.mxu0 0.0
    %1093 = vmatpush1.msra.mxu0 0.0
    %1094 = vmatprep.subr.mxu0 0.0
    %1095 = vmatpush1.msra.mxu0 0.0
    %1096 = vmatprep.subr.mxu0 0.0
    %1097 = vmatpush1.msra.mxu0 0.0
    %1098 = vmatprep.subr.mxu0 0.0
    %1099 = vmatpush1.msra.mxu0 0.0
    %1100 = vmatprep.subr.mxu0 0.0
    %1101 = vmatpush1.msra.mxu0 0.0
    %1102 = vmatprep.subr.mxu0 0.0
    %1103 = vmatpush1.msra.mxu0 0.0
    %1104 = vmatprep.subr.mxu0 0.0
    %1105 = vmatpush1.msra.mxu0 0.0
    %1106 = vmatprep.subr.mxu0 0.0
    %1107 = vmatpush1.msra.mxu0 %v1050
    %1108 = vmatprep.subr.mxu0 0.0
    %1109 = vmatpush1.msra.mxu0 %v1049
    %1110 = vmatprep.subr.mxu0 0.0
    %1111 = vmatpush1.msra.mxu0 %v1048
    %1112 = vmatprep.subr.mxu0 0.0
    %1113 = vmatpush1.msra.mxu0 %v1047
    %1114 = vmatprep.subr.mxu0 0.0
    %1115 = vmatpush2.msra.mxu0 0.0
    %1116 = vmatprep.subr.mxu0 0.0
    %1117 = vmatpush2.msra.mxu0 0.0
    %1118 = vmatprep.subr.mxu0 0.0
    %1119 = vmatpush2.msra.mxu0 0.0
    %1120 = vmatprep.subr.mxu0 0.0
    %1121 = vmatpush2.msra.mxu0 0.0
    %1122 = vmatprep.subr.mxu0 0.0
    %1123 = vmatpush2.msra.mxu0 0.0
    %1124 = vmatprep.subr.mxu0 0.0
    %1125 = vmatpush2.msra.mxu0 0.0
    %1126 = vmatprep.subr.mxu0 0.0
    %1127 = vmatpush2.msra.mxu0 0.0
    %1128 = vmatprep.subr.mxu0 0.0
    %1129 = vmatpush2.msra.mxu0 0.0
    %1130 = vmatprep.subr.mxu0 0.0
    %1131 = vmatpush2.msra.mxu0 0.0
    %1132 = vmatprep.subr.mxu0 0.0
    %1133 = vmatpush2.msra.mxu0 0.0
    %1134 = vmatprep.subr.mxu0 0.0
    %1135 = vmatpush2.msra.mxu0 0.0
    %1136 = vmatprep.subr.mxu0 0.0
    %1137 = vmatpush2.msra.mxu0 0.0
    %1138 = vmatprep.subr.mxu0 0.0
    %1139 = vmatpush2.msra.mxu0 0.0
    %1140 = vmatprep.subr.mxu0 0.0
    %1141 = vmatpush2.msra.mxu0 0.0
    %1142 = vmatprep.subr.mxu0 0.0
    %1143 = vmatpush2.msra.mxu0 0.0
    %1144 = vmatprep.subr.mxu0 0.0
    %1145 = vmatpush2.msra.mxu0 0.0
    %1146 = vmatprep.mubr.f32.mxu0 0.0
    %1147 = vmatmul.mubr.f32.gmra.mxu0 %v1059
    %v1148 = vpop.f32.mrf.mxu0
    %v1149 = vadd.f32 %v1056, %v1148
    %v1150 = vpop.f32.mrf.mxu0
    %1151 = vmatprep.mubr.f32.mxu0 0.0
    %1152 = vmatmul.mubr.f32.gmra.mxu0 %v1062
    %v1153 = vpop.f32.mrf.mxu0
    %v1154 = vadd.f32 %v1056, %v1153
    %v1155 = vpop.f32.mrf.mxu0
    %1156 = vmatprep.mubr.f32.mxu0 0.0
    %1157 = vmatmul.mubr.f32.gmra.mxu0 %v1065
    %v1158 = vpop.f32.mrf.mxu0
    %v1159 = vadd.f32 %v1056, %v1158
    %v1160 = vpop.f32.mrf.mxu0
    %1161 = vmatprep.mubr.f32.mxu0 0.0
    %1162 = vmatmul.mubr.f32.gmra.mxu0 %v1068
    %v1163 = vpop.f32.mrf.mxu0
    %v1164 = vadd.f32 %v1056, %v1163
    %v1165 = vpop.f32.mrf.mxu0
    %1166 = vmatprep.mubr.f32.mxu0 0.0
    %1167 = vmatmul.mubr.f32.gmra.mxu0 %v1071
    %v1168 = vpop.f32.mrf.mxu0
    %v1169 = vadd.f32 %v1056, %v1168
    %v1170 = vpop.f32.mrf.mxu0
    %1171 = vmatprep.mubr.f32.mxu0 0.0
    %1172 = vmatmul.mubr.f32.gmra.mxu0 %v1074
    %v1173 = vpop.f32.mrf.mxu0
    %v1174 = vadd.f32 %v1056, %v1173
    %v1175 = vpop.f32.mrf.mxu0
    %1176 = vmatprep.mubr.f32.mxu0 0.0
    %1177 = vmatmul.mubr.f32.gmra.mxu0 %v1077
    %v1178 = vpop.f32.mrf.mxu0
    %v1179 = vadd.f32 %v1056, %v1178
    %v1180 = vpop.f32.mrf.mxu0
    %1181 = vmatprep.mubr.f32.mxu0 0.0
    %1182 = vmatmul.mubr.f32.gmra.mxu0 %v1080
    %v1183 = vpop.f32.mrf.mxu0
    %v1184 = vadd.f32 %v1056, %v1183
    %v1185 = vpop.f32.mrf.mxu0
    %1186 = vdwg.mxu0
    %v1187 = vtanh.pop %v1149
    %v1188 = vtanh.pop %v1154
    %v1189 = vtanh.pop %v1159
    %v1190 = vtanh.pop %v1164
    %v1191 = vtanh.pop %v1169
    %v1192 = vtanh.pop %v1174
    %v1193 = vtanh.pop %v1179
    %v1194 = vtanh.pop %v1184
    %vm1195 = vcmask 31744
    %1196 = vst.msk [vmem:[%s6] sm:$0xff] %vm1195, %v1187
    %1197 = vst.msk [vmem:[%s6 + $0x8] sm:$0xff] %vm1195, %v1188
    %1198 = vst.msk [vmem:[%s6 + $0x10] sm:$0xff] %vm1195, %v1189
    %1199 = vst.msk [vmem:[%s6 + $0x18] sm:$0xff] %vm1195, %v1190
    %1200 = vst.msk [vmem:[%s6 + $0x20] sm:$0xff] %vm1195, %v1191
    %1201 = vst.msk [vmem:[%s6 + $0x28] sm:$0xff] %vm1195, %v1192
    %1202 = vst.msk [vmem:[%s6 + $0x30] sm:$0xff] %vm1195, %v1193
    %1203 = vst.msk [vmem:[%s6 + $0x38] sm:$0xff] %vm1195, %v1194
    // Predicated region
    $region38: #{tpu_custom_call.1} parent=1 // pred_check
      _
    $region39: #{tpu_custom_call.1} parent=1 // pred_check_branch
      %1205 = sbr.rel (0) target = $region41
    $region40: #{tpu_custom_call.1} parent=1 // pred_region
      _
    $region41: #{tpu_custom_call.1} parent=1 // pred_fallthru
      _
    // Predicated region
    $region42: #{tpu_custom_call.1} parent=1 // pred_check
      _
    $region43: #{tpu_custom_call.1} parent=1 // pred_check_branch
      %1207 = sbr.rel (0) target = $region45
    $region44: #{tpu_custom_call.1} parent=1 // pred_region
      _
    $region45: #{tpu_custom_call.1} parent=1 // pred_fallthru
      _
    %1208 = vsyncpa [#allocation6], 1
    %1209 = vsyncpa [#allocation8], 1

</llo_original>
